<compile_context>
chip_gen: v7x
topology: tpu7x:2x2x1
jax: 0.10.0
libtpu: 0.0.40
codegen_flags: <defaults>
</compile_context>

<pallas_src>
import jax
import jax.numpy as jnp
from jax.experimental import pallas as pl
from jax.experimental.pallas import tpu as pltpu


# ---------------------------------------------------------------------------
# Kernel
# ---------------------------------------------------------------------------
def llama_mlp_kernel(x_ref, w_gu_ref, w_down_ref, o_ref, acc_ref):
    # x_ref:      (tm, H)        activations tile
    # w_gu_ref:   (H, 2*ti)      fused [gate_k | up_k] weight tile (leading k dim squeezed)
    # w_down_ref: (ti, H)        down-proj weight tile (pre-transposed)
    # o_ref:      (tm, H)        output tile (resident across the k axis)
    # acc_ref:    (tm, H) f32    VMEM accumulator
    k = pl.program_id(1)

    @pl.when(k == 0)
    def _init():
        acc_ref[...] = jnp.zeros_like(acc_ref)

    x = x_ref[...]
    # One fused MXU pass for gate and up: (tm, H) @ (H, 2*ti) -> (tm, 2*ti), f32 acc.
    gu = jnp.dot(x, w_gu_ref[...], preferred_element_type=jnp.float32)
    ti = gu.shape[-1] // 2
    gate = gu[:, :ti]
    up = gu[:, ti:]

    # SiLU(gate) * up in f32; sigmoid lowers to the EUP slot (free vs MXU critical path).
    act = (gate * jax.nn.sigmoid(gate)) * up

    # Partial down-projection for this intermediate tile, accumulated in f32.
    acc_ref[...] += jnp.dot(act.astype(w_down_ref.dtype), w_down_ref[...],
                            preferred_element_type=jnp.float32)

    @pl.when(k == pl.num_programs(1) - 1)
    def _finalize():
        o_ref[...] = acc_ref[...].astype(o_ref.dtype)


# ---------------------------------------------------------------------------
# One-time weight re-layout (call at weight-load time, NOT per forward).
# ---------------------------------------------------------------------------
def prepare_llama_mlp_weights(w_gate_up, w_down, *, ti=512):
    """w_gate_up: [2*I, H] (nn.Linear layout), w_down: [H, I].

    Returns:
      w_gu_t:   [nk, H, 2*ti]  one CONTIGUOUS fused [gate_k | up_k] slab per k-tile,
                so each grid step's weight DMA is a single contiguous transfer.
      w_down_t: [I, H]         transposed down-proj weight (k-tile = ti full rows,
                               already contiguous).
    """
    two_I, H = w_gate_up.shape
    I = two_I // 2
    ti = min(ti, I)
    assert I % ti == 0, f"intermediate size {I} must be divisible by ti={ti}"
    nk = I // ti

    w_gate = w_gate_up[:I, :].reshape(nk, ti, H)
    w_up = w_gate_up[I:, :].reshape(nk, ti, H)
    fused = jnp.concatenate([w_gate, w_up], axis=1)      # (nk, 2*ti, H)
    w_gu_t = jnp.transpose(fused, (0, 2, 1))             # (nk, H, 2*ti), contiguous per tile
    w_down_t = w_down.T                                   # (I, H)
    return w_gu_t, w_down_t


# ---------------------------------------------------------------------------
# Sizing helpers
# ---------------------------------------------------------------------------
def _vmem_capacity_bytes():
    try:
        return int(pltpu.get_tpu_info().vmem_capacity_bytes)
    except Exception:
        return 64 * 1024 * 1024  # conservative (v7x per-TC)


def _default_tm(T):
    """Per-generation token tile: big enough to be MXU-bound, small enough for VMEM."""
    try:
        kind = jax.devices()[0].device_kind.lower()
    except Exception:
        kind = ""
    if "v5" in kind:
        tm = 256          # v5e roofline crossover ~240 flops/byte
    else:
        tm = 512          # v6e (needs ~650 fl/B; 512 + bf16 acts is close) and v7x (~310 fl/B)
    tm = min(tm, T)
    while tm > 8 and T % tm != 0:
        tm //= 2
    return max(tm, 8)


def _vmem_limit_bytes(tm, ti, H, act_itemsize, w_itemsize, out_itemsize, weight_buffers):
    wb = weight_buffers if weight_buffers else 2
    live = (2 * tm * H * act_itemsize          # x tiles (double-buffered)
            + wb * H * 2 * ti * w_itemsize     # fused gate/up weight tiles
            + wb * ti * H * w_itemsize         # down-proj weight tiles
            + 2 * tm * H * out_itemsize        # output tiles
            + tm * H * 4)                      # f32 accumulator (single copy)
    limit = int(live * 1.2) + (2 << 20)        # ~20% headroom for compiler temporaries
    cap = _vmem_capacity_bytes() - (8 << 20)   # leave room for Mosaic internal scratch
    return int(min(max(limit, 16 << 20), cap))


# ---------------------------------------------------------------------------
# Wrapper
# ---------------------------------------------------------------------------
def llama_mlp(x, w_gu_t, w_down_t, *, tm=None, weight_buffers=None):
    """x: [T, H]; w_gu_t: [nk, H, 2*ti] (from prepare_llama_mlp_weights); w_down_t: [I, H]."""
    T, H = x.shape
    nk, H_w, two_ti = w_gu_t.shape
    ti = two_ti // 2
    I = nk * ti
    assert H_w == H
    assert w_down_t.shape == (I, H)

    if tm is None:
        tm = _default_tm(T)
    assert T % tm == 0, "pad T to a multiple of tm"   # TODO(synk): ragged decode batches
    assert I % ti == 0

    act_itemsize = jnp.dtype(x.dtype).itemsize
    w_itemsize = jnp.dtype(w_gu_t.dtype).itemsize
    n_token_tiles = T // tm
    cost = pl.CostEstimate(
        flops=6 * T * H * I,                    # gate+up (4*T*H*I) + down (2*T*H*I)
        transcendentals=T * I,                  # one exp per intermediate element
        bytes_accessed=int(n_token_tiles * 3 * H * I * w_itemsize   # weights re-streamed per token tile
                           + 2 * T * H * act_itemsize),             # activations in + out
    )

    w_spec_kwargs = {}
    if weight_buffers is not None and weight_buffers != 2:
        w_spec_kwargs = dict(pipeline_mode=pl.Buffered(weight_buffers))

    grid = (T // tm, I // ti)
    return pl.pallas_call(
        llama_mlp_kernel,
        out_shape=jax.ShapeDtypeStruct((T, H), x.dtype),
        grid_spec=pltpu.PrefetchScalarGridSpec(
            num_scalar_prefetch=0,
            grid=grid,
            in_specs=[
                pl.BlockSpec((tm, H), lambda i, k: (i, 0)),                       # x
                pl.BlockSpec((None, H, 2 * ti), lambda i, k: (k, 0, 0),           # fused gate/up
                             **w_spec_kwargs),                                    #   (contiguous k-tile)
                pl.BlockSpec((ti, H), lambda i, k: (k, 0), **w_spec_kwargs),      # down-proj tile k
            ],
            out_specs=pl.BlockSpec((tm, H), lambda i, k: (i, 0)),                 # resident over k
            scratch_shapes=[pltpu.VMEM((tm, H), jnp.float32)],
        ),
        compiler_params=pltpu.CompilerParams(
            dimension_semantics=("parallel", "arbitrary"),
            vmem_limit_bytes=_vmem_limit_bytes(
                tm, ti, H, act_itemsize, w_itemsize,
                jnp.dtype(x.dtype).itemsize, weight_buffers),
        ),
        cost_estimate=cost,
    )(x, w_gu_t, w_down_t)


# ---------------------------------------------------------------------------
# Pure-JAX reference matching the PyTorch forward.
# ---------------------------------------------------------------------------
def llama_mlp_ref(x, w_gate_up, w_down):
    gu = x @ w_gate_up.T
    I = gu.shape[-1] // 2
    gate, up = gu[..., :I], gu[..., I:]
    act = jax.nn.silu(gate) * up
    return act @ w_down.T


if __name__ == "__main__":
    # Small-but-tiled shapes: 256 tokens, hidden=256, intermediate=512.
    # tm=128, ti=256 -> grid (2, 2): both axes exercise the pipeline/accumulator.
    T, H, I = 256, 256, 512
    tm, ti = 128, 256

    key = jax.random.PRNGKey(0)
    k_x, k_gu, k_d = jax.random.split(key, 3)

    x = jax.random.normal(k_x, (T, H), dtype=jnp.float32)
    # nn.Linear weight layouts: gate_up_proj.weight -> (2*I, H), down_proj.weight -> (H, I)
    w_gate_up = jax.random.normal(k_gu, (2 * I, H), dtype=jnp.float32) * 0.05
    w_down = jax.random.normal(k_d, (H, I), dtype=jnp.float32) * 0.05

    ref = llama_mlp_ref(x, w_gate_up, w_down)

    # --- f32 path, explicit small tiles (tight correctness check) ---
    w_gu_t, w_down_t = prepare_llama_mlp_weights(w_gate_up, w_down, ti=ti)
    out = jax.block_until_ready(llama_mlp(x, w_gu_t, w_down_t, tm=tm))
    assert out.shape == (T, H)
    assert jnp.allclose(out, ref, atol=1e-4, rtol=1e-4), "f32 mismatch vs reference"

    # --- f32 path, auto tile selection (exercises the per-generation defaults) ---
    w_gu_auto, w_down_auto = prepare_llama_mlp_weights(w_gate_up, w_down)  # ti clamped to I
    out_auto = jax.block_until_ready(llama_mlp(x, w_gu_auto, w_down_auto))
    assert jnp.allclose(out_auto, ref, atol=1e-4, rtol=1e-4), "auto-tile mismatch vs reference"

    # --- bf16 serving path (weights prepared once at "load time"; loose check) ---
    w_gu_bf, w_down_bf = prepare_llama_mlp_weights(
        w_gate_up.astype(jnp.bfloat16), w_down.astype(jnp.bfloat16), ti=ti)
    out_bf = jax.block_until_ready(
        llama_mlp(x.astype(jnp.bfloat16), w_gu_bf, w_down_bf, tm=tm))
    max_err = jnp.max(jnp.abs(out_bf.astype(jnp.float32) - ref))
    assert max_err < 0.25, f"bf16 path diverged: max_err={max_err}"

    print("KERNEL_OK")
</pallas_src>

<mosaic_0001>
module attributes {stable_mosaic.version = 11 : i64} {
  func.func @llama_mlp_kernel(%arg0: i32, %arg1: i32, %arg2: memref<128x256xf32, #tpu.memory_space<vmem>>, %arg3: memref<1x256x512xf32, #tpu.memory_space<vmem>>, %arg4: memref<256x256xf32, #tpu.memory_space<vmem>>, %arg5: memref<128x256xf32, #tpu.memory_space<vmem>>, %arg6: memref<128x256xf32, #tpu.memory_space<vmem>>) attributes {dimension_semantics = [#tpu.dimension_semantics<parallel>, #tpu.dimension_semantics<arbitrary>], iteration_bounds = array<i64: 2, 2>, scalar_prefetch = 0 : i64, scratch_operands = 1 : i64, tpu.core_type = #tpu.core_type<tc>, window_params = [{transform_indices = @transform_0, window_bounds = array<i64: 128, 256>}, {transform_indices = @transform_1, window_bounds = array<i64: 1, 256, 512>}, {transform_indices = @transform_2, window_bounds = array<i64: 256, 256>}, {transform_indices = @transform_3, window_bounds = array<i64: 128, 256>}]} {
    %c0_i32 = arith.constant 0 : i32
    %0 = arith.cmpi eq, %arg1, %c0_i32 : i32
    %1 = arith.extui %0 : i1 to i32
    %c0_i32_0 = arith.constant 0 : i32
    %2 = arith.cmpi ne, %1, %c0_i32_0 : i32
    scf.if %2 {
      %cst_14 = arith.constant 0.000000e+00 : f32
      %24 = vector.broadcast %cst_14 : f32 to vector<128x256xf32>
      %c0_15 = arith.constant 0 : index
      %c0_16 = arith.constant 0 : index
      %25 = vector.load %arg6[%c0_15, %c0_16] : memref<128x256xf32, #tpu.memory_space<vmem>>, vector<128x256xf32>
      tpu.vector_store %arg6[%c0_15, %c0_16], %24 {strides = array<i32>} : memref<128x256xf32, #tpu.memory_space<vmem>>, vector<128x256xf32>,
    } else {
    }
    %c0 = arith.constant 0 : index
    %c0_1 = arith.constant 0 : index
    %3 = vector.load %arg2[%c0, %c0_1] : memref<128x256xf32, #tpu.memory_space<vmem>>, vector<128x256xf32>
    %c0_2 = arith.constant 0 : index
    %c0_3 = arith.constant 0 : index
    %c0_4 = arith.constant 0 : index
    %4 = vector.load %arg3[%c0_2, %c0_3, %c0_4] : memref<1x256x512xf32, #tpu.memory_space<vmem>>, vector<1x256x512xf32>
    %5 = vector.shape_cast %4 : vector<1x256x512xf32> to vector<256x512xf32>
    %cst = arith.constant dense<0.000000e+00> : vector<128x512xf32>
    %6 = tpu.matmul %3, %5, %cst {dimension_numbers = #tpu.dot_dimension_numbers<[1], [0], [0], [1], [0, 0, 1, 1], [], []>} : vector<128x256xf32>, vector<256x512xf32>, vector<128x512xf32> -> vector<128x512xf32>
    %7 = vector.extract_strided_slice %6 {offsets = [0, 0], sizes = [128, 256], strides = [1, 1]} : vector<128x512xf32> to vector<128x256xf32>
    %8 = vector.extract_strided_slice %6 {offsets = [0, 256], sizes = [128, 256], strides = [1, 1]} : vector<128x512xf32> to vector<128x256xf32>
    %9 = arith.negf %7 : vector<128x256xf32>
    %10 = math.exp %9 : vector<128x256xf32>
    %cst_5 = arith.constant 1.000000e+00 : f32
    %11 = vector.broadcast %cst_5 : f32 to vector<128x256xf32>
    %12 = arith.addf %11, %10 : vector<128x256xf32>
    %13 = arith.divf %11, %12 : vector<128x256xf32>
    %14 = arith.mulf %7, %13 : vector<128x256xf32>
    %15 = arith.mulf %14, %8 : vector<128x256xf32>
    %c0_6 = arith.constant 0 : index
    %c0_7 = arith.constant 0 : index
    %16 = vector.load %arg6[%c0_6, %c0_7] : memref<128x256xf32, #tpu.memory_space<vmem>>, vector<128x256xf32>
    %c0_8 = arith.constant 0 : index
    %c0_9 = arith.constant 0 : index
    %17 = vector.load %arg4[%c0_8, %c0_9] : memref<256x256xf32, #tpu.memory_space<vmem>>, vector<256x256xf32>
    %cst_10 = arith.constant dense<0.000000e+00> : vector<128x256xf32>
    %18 = tpu.matmul %15, %17, %cst_10 {dimension_numbers = #tpu.dot_dimension_numbers<[1], [0], [0], [1], [0, 0, 1, 1], [], []>} : vector<128x256xf32>, vector<256x256xf32>, vector<128x256xf32> -> vector<128x256xf32>
    %19 = arith.addf %16, %18 : vector<128x256xf32>
    %c0_11 = arith.constant 0 : index
    %c0_12 = arith.constant 0 : index
    %20 = vector.load %arg6[%c0_11, %c0_12] : memref<128x256xf32, #tpu.memory_space<vmem>>, vector<128x256xf32>
    tpu.vector_store %arg6[%c0_11, %c0_12], %19 {strides = array<i32>} : memref<128x256xf32, #tpu.memory_space<vmem>>, vector<128x256xf32>,
    %c1_i32 = arith.constant 1 : i32
    %21 = arith.cmpi eq, %arg1, %c1_i32 : i32
    %22 = arith.extui %21 : i1 to i32
    %c0_i32_13 = arith.constant 0 : i32
    %23 = arith.cmpi ne, %22, %c0_i32_13 : i32
    scf.if %23 {
      %c0_14 = arith.constant 0 : index
      %c0_15 = arith.constant 0 : index
      %24 = vector.load %arg6[%c0_14, %c0_15] : memref<128x256xf32, #tpu.memory_space<vmem>>, vector<128x256xf32>
      %c0_16 = arith.constant 0 : index
      %c0_17 = arith.constant 0 : index
      %25 = vector.load %arg5[%c0_16, %c0_17] : memref<128x256xf32, #tpu.memory_space<vmem>>, vector<128x256xf32>
      tpu.vector_store %arg5[%c0_16, %c0_17], %24 {strides = array<i32>} : memref<128x256xf32, #tpu.memory_space<vmem>>, vector<128x256xf32>,
    } else {
    }
    return
  }
  func.func @transform_0(%arg0: i32, %arg1: i32) -> (i32, i32) {
    %c0_i32 = arith.constant 0 : i32
    %c0_i32_0 = arith.constant 0 : i32
    return %arg0, %c0_i32 : i32, i32
  }
  func.func @transform_1(%arg0: i32, %arg1: i32) -> (i32, i32, i32) {
    %c0_i32 = arith.constant 0 : i32
    %c0_i32_0 = arith.constant 0 : i32
    %c0_i32_1 = arith.constant 0 : i32
    return %arg1, %c0_i32, %c0_i32_0 : i32, i32, i32
  }
  func.func @transform_2(%arg0: i32, %arg1: i32) -> (i32, i32) {
    %c0_i32 = arith.constant 0 : i32
    %c0_i32_0 = arith.constant 0 : i32
    return %arg1, %c0_i32 : i32, i32
  }
  func.func @transform_3(%arg0: i32, %arg1: i32) -> (i32, i32) {
    %c0_i32 = arith.constant 0 : i32
    %c0_i32_0 = arith.constant 0 : i32
    return %arg0, %c0_i32 : i32, i32
  }
}

</mosaic_0001>

<llo_original>
// kernel: tpu_custom_call.1
$region0: #{tpu_custom_call.1}
  #allocation0 [shape = 'u32[]', space=smem, size = 0x4, offset = 0x4, fixed_abs, tag = 'smem constant byte address 0x4 - core index']
  #allocation1 [shape = 'u32[144,128]{1,0:T(1,128)}', space=vmem, size = 0x12000, scoped, tag = 'internal scratch']
  #allocation2 [shape = 'f32[128,256]{1,0:T(8,128)}', space=vmem, size = 0x20000, scoped, tag = 'scratch operand']
  %s0 = inlined_call_operand.hbm [shape: f32[256,256], index: 0, kind: input, shape index: {}]
  %s1 = inlined_call_operand.hbm [shape: f32[2,256,512], index: 1, kind: input, shape index: {}]
  %s2 = inlined_call_operand.hbm [shape: f32[512,256], index: 2, kind: input, shape index: {}]
  %s3 = inlined_call_operand.hbm [shape: f32[256,256], index: 3, kind: output, shape index: {}]
  %s4 = sld [smem:[#allocation0]]
  $region65: #{tpu_custom_call.1} parent=0
    _
  %s6 = ssub.s32 1, %s4
  %s7 = scalar_select 0, %s6, %s4
  $region1: #{tpu_custom_call.1} parent=0
    #allocation3 [shape = 'u8[262144]{0}', space=vmem, size = 0x40000, scoped, tag = 'input window, operand 0']
    #allocation4 [shape = 's32[2]{0}', space=sflag, size = 0x8, scoped, tag = 'scoped memory for tpu_custom_call.1']
    #allocation5 [shape = 's32[2]{0}', space=sflag, size = 0x8, scoped, tag = 'scoped memory for tpu_custom_call.1']
    #allocation6 [shape = 'u8[1048576]{0}', space=vmem, size = 0x100000, scoped, tag = 'input window, operand 1']
    #allocation7 [shape = 's32[2]{0}', space=sflag, size = 0x8, scoped, tag = 'scoped memory for tpu_custom_call.1']
    #allocation8 [shape = 'u8[524288]{0}', space=vmem, size = 0x80000, scoped, tag = 'input window, operand 2']
    #allocation9 [shape = 'u8[262144]{0}', space=vmem, size = 0x40000, scoped, tag = 'output window, operand 0']
    %8 = vsyncpa [#allocation4], 0
    %s9 = scalar_lea.sflag [#allocation4], 1
    %10 = vsyncpa %s9, 0
    %11 = vsyncpa [#allocation7], 0
    %s12 = scalar_lea.sflag [#allocation7], 1
    %13 = vsyncpa %s12, 0
    %14 = vsyncpa [#allocation5], 0
    %s15 = scalar_lea.sflag [#allocation5], 1
    %16 = vsyncpa %s15, 0
    loop: start=0, step=1, limit=6
    $region2: #{tpu_custom_call.1} parent=1 // loop_pre_header
      _
    $region3: #{tpu_custom_call.1} parent=1 // loop_header
      %s18 = sphi 0, %s22
      %p19 = scmp.ge.s32.totalorder %s18, 6
      %s25 = sphi 0, %s37
      %s26 = sphi 0, %s33
      %s27 = sphi 0, %s25
      %s28 = sphi 0, %s26
      %s29 = sphi 0, %s27
      %s30 = sphi 0, %s28
      %s40 = sphi 0, %s42
      %s43 = sphi 0, %s40
      %s44 = sphi 0, %s43
      %s60 = sphi 0, %s44
      %s66 = sphi 0, %s68
      %s69 = sphi 0, %s66
      %s70 = sphi 0, %s69
      %s86 = sphi 0, %s70
      %s92 = sphi 0, %s94
      %s95 = sphi 0, %s92
      %s96 = sphi 0, %s95
      %s112 = sphi 0, %s96
      %s118 = sphi 0, %s120
      %s121 = sphi 0, %s118
      %s122 = sphi 0, %s121
      %s138 = sphi 0, %s122
    $region4: #{tpu_custom_call.1} parent=1 // loop_header_branch
      %21 = sbr.rel (%p19) target = $region8
    $region5: #{tpu_custom_call.1} parent=1 // loop_body
      %s23 = ssub.s32 %s18, 1
      %s24 = ssub.s32 %s18, 2
      %s31 = sadd.s32 1, %s26
      %p32 = scmp.ge.s32.totalorder %s31, 2
      %s33 = scalar_select %p32, 0, %s31
      %s34 = sadd.s32 1, %s25
      %s35 = scalar_select %p32, %s34, %s25
      %p36 = scmp.ge.s32.totalorder %s35, 2
      %s37 = scalar_select %p36, 0, %s35
      %s38 = ssub.s32 %s25, %s37
      %p39 = scmp.eq.s32.totalorder %s38, 0
      %s41 = sadd.s32 %s40, 1
      %s42 = scalar_select %p39, %s40, %s41
      %p45 = pneg %p39
      %p46 = scmp.eq.s32.totalorder %s18, 3
      %p47 = por %p45, %p46
      %p48 = scmp.ne.s32.totalorder %s40, %s43
      %p49 = scmp.eq.s32.totalorder %s18, 0
      %p50 = por %p48, %p49
      %p51 = scmp.ne.s32.totalorder %s40, %s43
      %p52 = scmp.eq.s32.totalorder %s23, 3
      %p53 = por %p51, %p52
      %p54 = scmp.ne.s32.totalorder %s43, %s44
      %p55 = scmp.eq.s32.totalorder %s23, 0
      %p56 = por %p54, %p55
      %p57 = scmp.ne.s32.totalorder %s43, %s44
      %p58 = scmp.eq.s32.totalorder %s24, 3
      %p59 = por %p57, %p58
      %p61 = scmp.ne.s32.totalorder %s44, %s60
      %p62 = scmp.eq.s32.totalorder %s24, 0
      %p63 = por %p61, %p62
      %s64 = ssub.s32 %s26, %s33
      %p65 = scmp.eq.s32.totalorder %s64, 0
      %s67 = sadd.s32 %s66, 1
      %s68 = scalar_select %p65, %s66, %s67
      %p71 = pneg %p65
      %p72 = scmp.eq.s32.totalorder %s18, 3
      %p73 = por %p71, %p72
      %p74 = scmp.ne.s32.totalorder %s66, %s69
      %p75 = scmp.eq.s32.totalorder %s18, 0
      %p76 = por %p74, %p75
      %p77 = scmp.ne.s32.totalorder %s66, %s69
      %p78 = scmp.eq.s32.totalorder %s23, 3
      %p79 = por %p77, %p78
      %p80 = scmp.ne.s32.totalorder %s69, %s70
      %p81 = scmp.eq.s32.totalorder %s23, 0
      %p82 = por %p80, %p81
      %p83 = scmp.ne.s32.totalorder %s69, %s70
      %p84 = scmp.eq.s32.totalorder %s24, 3
      %p85 = por %p83, %p84
      %p87 = scmp.ne.s32.totalorder %s70, %s86
      %p88 = scmp.eq.s32.totalorder %s24, 0
      %p89 = por %p87, %p88
      %s90 = ssub.s32 %s26, %s33
      %p91 = scmp.eq.s32.totalorder %s90, 0
      %s93 = sadd.s32 %s92, 1
      %s94 = scalar_select %p91, %s92, %s93
      %p97 = pneg %p91
      %p98 = scmp.eq.s32.totalorder %s18, 3
      %p99 = por %p97, %p98
      %p100 = scmp.ne.s32.totalorder %s92, %s95
      %p101 = scmp.eq.s32.totalorder %s18, 0
      %p102 = por %p100, %p101
      %p103 = scmp.ne.s32.totalorder %s92, %s95
      %p104 = scmp.eq.s32.totalorder %s23, 3
      %p105 = por %p103, %p104
      %p106 = scmp.ne.s32.totalorder %s95, %s96
      %p107 = scmp.eq.s32.totalorder %s23, 0
      %p108 = por %p106, %p107
      %p109 = scmp.ne.s32.totalorder %s95, %s96
      %p110 = scmp.eq.s32.totalorder %s24, 3
      %p111 = por %p109, %p110
      %p113 = scmp.ne.s32.totalorder %s96, %s112
      %p114 = scmp.eq.s32.totalorder %s24, 0
      %p115 = por %p113, %p114
      %s116 = ssub.s32 %s25, %s37
      %p117 = scmp.eq.s32.totalorder %s116, 0
      %s119 = sadd.s32 %s118, 1
      %s120 = scalar_select %p117, %s118, %s119
      %p123 = pneg %p117
      %p124 = scmp.eq.s32.totalorder %s18, 3
      %p125 = por %p123, %p124
      %p126 = scmp.ne.s32.totalorder %s118, %s121
      %p127 = scmp.eq.s32.totalorder %s18, 0
      %p128 = por %p126, %p127
      %p129 = scmp.ne.s32.totalorder %s118, %s121
      %p130 = scmp.eq.s32.totalorder %s23, 3
      %p131 = por %p129, %p130
      %p132 = scmp.ne.s32.totalorder %s121, %s122
      %p133 = scmp.eq.s32.totalorder %s23, 0
      %p134 = por %p132, %p133
      %p135 = scmp.ne.s32.totalorder %s121, %s122
      %p136 = scmp.eq.s32.totalorder %s24, 3
      %p137 = por %p135, %p136
      %p139 = scmp.ne.s32.totalorder %s122, %s138
      %p140 = scmp.eq.s32.totalorder %s24, 0
      %p141 = por %p139, %p140
      %p142 = scmp.le.s32.totalorder 1, %s18
      %p143 = scmp.lt.s32.totalorder %s18, 5
      %p144 = pnand %p142, %p143
      %p145 = pneg %p144
      // Predicated region
      $region9: #{tpu_custom_call.1} parent=5 // pred_check
        _
      $region10: #{tpu_custom_call.1} parent=5 // pred_check_branch
        %147 = sbr.rel (%p144) target = $region12
      $region11: #{tpu_custom_call.1} parent=5 // pred_region
        %s148 = ssub.s32 %s18, 1
      $region12: #{tpu_custom_call.1} parent=5 // pred_fallthru
        _
      %p149 = scmp.lt.s32.totalorder %s18, 4
      // Predicated region
      $region13: #{tpu_custom_call.1} parent=5 // pred_check
        %p150 = pneg %p149
      $region14: #{tpu_custom_call.1} parent=5 // pred_check_branch
        %152 = sbr.rel (%p150) target = $region16
      $region15: #{tpu_custom_call.1} parent=5 // pred_region
        // Predicated region
        $region17: #{tpu_custom_call.1} parent=15 // pred_check
          %p153 = pneg %p50
        $region18: #{tpu_custom_call.1} parent=15 // pred_check_branch
          %155 = sbr.rel (%p153) target = $region20
        $region19: #{tpu_custom_call.1} parent=15 // pred_region
          %s156 = sand.u32 %s40, 1
          %s157 = scalar_lea.sflag [#allocation4], %s156
          %s158 = sand.u32 %s40, 1
          %s159 = smul.addr %s158, 256
          %s160 = scalar_lea.vmem [#allocation3], %s159
          %s161 = smul.u32 16, %s25
          %s163 = ssub.s32 4096, 4096
          %164 = vsyncadd %s157, %s163
          %s165 = smul.addr %s161, 2
          %s166 = smul.addr %s165, 128
          %s167 = scalar_lea.hbm %s0, %s166
          %s168 = sshll.u32 %s160, 4
          %s169 = int_to_ptr.vmem [resolvable:$true] %s168
          %174 = dma.hbm_to_vmem [thread:$0]  %s167, 4096, %s169, %s157, 256, 256, 16
        $region20: #{tpu_custom_call.1} parent=15 // pred_fallthru
          _
        // Predicated region
        $region21: #{tpu_custom_call.1} parent=15 // pred_check
          %p175 = pneg %p76
        $region22: #{tpu_custom_call.1} parent=15 // pred_check_branch
          %177 = sbr.rel (%p175) target = $region24
        $region23: #{tpu_custom_call.1} parent=15 // pred_region
          %s178 = sand.u32 %s18, 1
          %s179 = scalar_lea.sflag [#allocation7], %s178
          %s180 = sand.u32 %s66, 1
          %s181 = smul.addr %s180, 1024
          %s182 = scalar_lea.vmem [#allocation6], %s181
          %s184 = ssub.s32 16384, 16384
          %185 = vsyncadd %s179, %s184
          %s186 = smul.addr %s26, 128
          %s187 = smul.addr %s186, 128
          %s188 = scalar_lea.hbm %s1, %s187
          %s189 = sshll.u32 %s182, 4
          %s190 = int_to_ptr.vmem [resolvable:$true] %s189
          %195 = dma.hbm_to_vmem [thread:$0]  %s188, 16384, %s190, %s179, 512, 512, 32
        $region24: #{tpu_custom_call.1} parent=15 // pred_fallthru
          _
        // Predicated region
        $region25: #{tpu_custom_call.1} parent=15 // pred_check
          %p196 = pneg %p102
        $region26: #{tpu_custom_call.1} parent=15 // pred_check_branch
          %198 = sbr.rel (%p196) target = $region28
        $region27: #{tpu_custom_call.1} parent=15 // pred_region
          %s199 = sand.u32 %s18, 1
          %s200 = scalar_lea.sflag [#allocation7], %s199
          %s201 = sand.u32 %s92, 1
          %s202 = smul.addr %s201, 512
          %s203 = scalar_lea.vmem [#allocation8], %s202
          %s204 = smul.u32 32, %s26
          %s206 = ssub.s32 8192, 8192
          %207 = vsyncadd %s200, %s206
          %s208 = smul.addr %s204, 2
          %s209 = smul.addr %s208, 128
          %s210 = scalar_lea.hbm %s2, %s209
          %s211 = sshll.u32 %s203, 4
          %s212 = int_to_ptr.vmem [resolvable:$true] %s211
          %217 = dma.hbm_to_vmem [thread:$0]  %s210, 8192, %s212, %s200, 256, 256, 16
        $region28: #{tpu_custom_call.1} parent=15 // pred_fallthru
          _
      $region16: #{tpu_custom_call.1} parent=5 // pred_fallthru
        _
      %p218 = scmp.le.s32.totalorder 1, %s18
      %p219 = scmp.lt.s32.totalorder %s18, 5
      %p220 = pnand %p218, %p219
      %p221 = pneg %p220
      // Predicated region
      $region29: #{tpu_custom_call.1} parent=5 // pred_check
        _
      $region30: #{tpu_custom_call.1} parent=5 // pred_check_branch
        %223 = sbr.rel (%p220) target = $region32
      $region31: #{tpu_custom_call.1} parent=5 // pred_region
        %s224 = ssub.s32 %s18, 1
        %s225 = sand.u32 %s43, 1
        %s226 = scalar_lea.sflag [#allocation4], %s225
        %s227 = sand.u32 %s43, 1
        %s228 = smul.addr %s227, 256
        %s229 = scalar_lea.vmem [#allocation3], %s228
        // Predicated region
        $region33: #{tpu_custom_call.1} parent=31 // pred_check
          %p230 = pneg %p56
        $region34: #{tpu_custom_call.1} parent=31 // pred_check_branch
          %232 = sbr.rel (%p230) target = $region36
        $region35: #{tpu_custom_call.1} parent=31 // pred_region
          %233 = dma.done %s226, 4096
        $region36: #{tpu_custom_call.1} parent=31 // pred_fallthru
          _
        %s234 = sand.u32 %s23, 1
        %s235 = scalar_lea.sflag [#allocation7], %s234
        %s236 = sand.u32 %s69, 1
        %s237 = smul.addr %s236, 1024
        %s238 = scalar_lea.vmem [#allocation6], %s237
        // Predicated region
        $region37: #{tpu_custom_call.1} parent=31 // pred_check
          %p239 = pneg %p82
        $region38: #{tpu_custom_call.1} parent=31 // pred_check_branch
          %241 = sbr.rel (%p239) target = $region40
        $region39: #{tpu_custom_call.1} parent=31 // pred_region
          %242 = dma.done %s235, 16384
        $region40: #{tpu_custom_call.1} parent=31 // pred_fallthru
          _
        %s243 = sand.u32 %s23, 1
        %s244 = scalar_lea.sflag [#allocation7], %s243
        %s245 = sand.u32 %s95, 1
        %s246 = smul.addr %s245, 512
        %s247 = scalar_lea.vmem [#allocation8], %s246
        // Predicated region
        $region41: #{tpu_custom_call.1} parent=31 // pred_check
          %p248 = pneg %p108
        $region42: #{tpu_custom_call.1} parent=31 // pred_check_branch
          %250 = sbr.rel (%p248) target = $region44
        $region43: #{tpu_custom_call.1} parent=31 // pred_region
          %251 = dma.done %s244, 8192
        $region44: #{tpu_custom_call.1} parent=31 // pred_fallthru
          _
        %s252 = sand.u32 %s43, 1
        %s253 = scalar_lea.sflag [#allocation4], %s252
        %s254 = sand.u32 %s43, 1
        %s255 = smul.addr %s254, 256
        %s256 = scalar_lea.vmem [#allocation3], %s255
        %p257 = pneg %p56
        %p258 = pneg %p53
        %s259 = sand.u32 %s23, 1
        %s260 = scalar_lea.sflag [#allocation7], %s259
        %s261 = sand.u32 %s69, 1
        %s262 = smul.addr %s261, 1024
        %s263 = scalar_lea.vmem [#allocation6], %s262
        %p264 = pneg %p82
        %p265 = pneg %p79
        %s266 = sand.u32 %s23, 1
        %s267 = scalar_lea.sflag [#allocation7], %s266
        %s268 = sand.u32 %s95, 1
        %s269 = smul.addr %s268, 512
        %s270 = scalar_lea.vmem [#allocation8], %s269
        %p271 = pneg %p108
        %p272 = pneg %p105
        %p273 = pneg %p134
        %p274 = pneg %p131
        %s275 = sand.u32 %s121, 1
        %s276 = scalar_lea.sflag [#allocation5], %s275
        %s277 = sand.u32 %s121, 1
        %s278 = smul.addr %s277, 256
        %s279 = scalar_lea.vmem [#allocation9], %s278
        %s280 = smul.u32 16, %s27
        %s281 = smul.u32 32, %s28
        %s282 = smul.u32 16, %s27
        %p283 = scmp.eq.s32.totalorder %s28, 0
        // Predicated region
        $region45: #{tpu_custom_call.1} parent=31 // pred_check
          %p284 = pneg %p283
        $region46: #{tpu_custom_call.1} parent=31 // pred_check_branch
          %286 = sbr.rel (%p284) target = $region48
        $region47: #{tpu_custom_call.1} parent=31 // pred_region
          %287 = vst [vmem:[#allocation2] sm:$0xff] 0.0
          %288 = vst [vmem:[#allocation2 + $0x8] sm:$0xff] 0.0
          %289 = vst [vmem:[#allocation2 + $0x10] sm:$0xff] 0.0
          %290 = vst [vmem:[#allocation2 + $0x18] sm:$0xff] 0.0
          %291 = vst [vmem:[#allocation2 + $0x20] sm:$0xff] 0.0
          %292 = vst [vmem:[#allocation2 + $0x28] sm:$0xff] 0.0
          %293 = vst [vmem:[#allocation2 + $0x30] sm:$0xff] 0.0
          %294 = vst [vmem:[#allocation2 + $0x38] sm:$0xff] 0.0
          %295 = vst [vmem:[#allocation2 + $0x40] sm:$0xff] 0.0
          %296 = vst [vmem:[#allocation2 + $0x48] sm:$0xff] 0.0
          %297 = vst [vmem:[#allocation2 + $0x50] sm:$0xff] 0.0
          %298 = vst [vmem:[#allocation2 + $0x58] sm:$0xff] 0.0
          %299 = vst [vmem:[#allocation2 + $0x60] sm:$0xff] 0.0
          %300 = vst [vmem:[#allocation2 + $0x68] sm:$0xff] 0.0
          %301 = vst [vmem:[#allocation2 + $0x70] sm:$0xff] 0.0
          %302 = vst [vmem:[#allocation2 + $0x78] sm:$0xff] 0.0
          %303 = vst [vmem:[#allocation2 + $0x80] sm:$0xff] 0.0
          %304 = vst [vmem:[#allocation2 + $0x88] sm:$0xff] 0.0
          %305 = vst [vmem:[#allocation2 + $0x90] sm:$0xff] 0.0
          %306 = vst [vmem:[#allocation2 + $0x98] sm:$0xff] 0.0
          %307 = vst [vmem:[#allocation2 + $0xa0] sm:$0xff] 0.0
          %308 = vst [vmem:[#allocation2 + $0xa8] sm:$0xff] 0.0
          %309 = vst [vmem:[#allocation2 + $0xb0] sm:$0xff] 0.0
          %310 = vst [vmem:[#allocation2 + $0xb8] sm:$0xff] 0.0
          %311 = vst [vmem:[#allocation2 + $0xc0] sm:$0xff] 0.0
          %312 = vst [vmem:[#allocation2 + $0xc8] sm:$0xff] 0.0
          %313 = vst [vmem:[#allocation2 + $0xd0] sm:$0xff] 0.0
          %314 = vst [vmem:[#allocation2 + $0xd8] sm:$0xff] 0.0
          %315 = vst [vmem:[#allocation2 + $0xe0] sm:$0xff] 0.0
          %316 = vst [vmem:[#allocation2 + $0xe8] sm:$0xff] 0.0
          %317 = vst [vmem:[#allocation2 + $0xf0] sm:$0xff] 0.0
          %318 = vst [vmem:[#allocation2 + $0xf8] sm:$0xff] 0.0
        $region48: #{tpu_custom_call.1} parent=31 // pred_fallthru
          _
        %v319 = vld [vmem:[%s229] sm:$0xff]
        %v320 = vld [vmem:[%s229 + $0x8] sm:$0xff]
        %v321 = vld [vmem:[%s229 + $0x10] sm:$0xff]
        %v322 = vld [vmem:[%s229 + $0x18] sm:$0xff]
        %v323 = vld [vmem:[%s229 + $0x20] sm:$0xff]
        %v324 = vld [vmem:[%s229 + $0x28] sm:$0xff]
        %v325 = vld [vmem:[%s229 + $0x30] sm:$0xff]
        %v326 = vld [vmem:[%s229 + $0x38] sm:$0xff]
        %v327 = vld [vmem:[%s229 + $0x40] sm:$0xff]
        %v328 = vld [vmem:[%s229 + $0x48] sm:$0xff]
        %v329 = vld [vmem:[%s229 + $0x50] sm:$0xff]
        %v330 = vld [vmem:[%s229 + $0x58] sm:$0xff]
        %v331 = vld [vmem:[%s229 + $0x60] sm:$0xff]
        %v332 = vld [vmem:[%s229 + $0x68] sm:$0xff]
        %v333 = vld [vmem:[%s229 + $0x70] sm:$0xff]
        %v334 = vld [vmem:[%s229 + $0x78] sm:$0xff]
        %v335 = vld [vmem:[%s229 + $0x80] sm:$0xff]
        %v336 = vld [vmem:[%s229 + $0x88] sm:$0xff]
        %v337 = vld [vmem:[%s229 + $0x90] sm:$0xff]
        %v338 = vld [vmem:[%s229 + $0x98] sm:$0xff]
        %v339 = vld [vmem:[%s229 + $0xa0] sm:$0xff]
        %v340 = vld [vmem:[%s229 + $0xa8] sm:$0xff]
        %v341 = vld [vmem:[%s229 + $0xb0] sm:$0xff]
        %v342 = vld [vmem:[%s229 + $0xb8] sm:$0xff]
        %v343 = vld [vmem:[%s229 + $0xc0] sm:$0xff]
        %v344 = vld [vmem:[%s229 + $0xc8] sm:$0xff]
        %v345 = vld [vmem:[%s229 + $0xd0] sm:$0xff]
        %v346 = vld [vmem:[%s229 + $0xd8] sm:$0xff]
        %v347 = vld [vmem:[%s229 + $0xe0] sm:$0xff]
        %v348 = vld [vmem:[%s229 + $0xe8] sm:$0xff]
        %v349 = vld [vmem:[%s229 + $0xf0] sm:$0xff]
        %v350 = vld [vmem:[%s229 + $0xf8] sm:$0xff]
        %v351 = vld [vmem:[%s238] sm:$0xff]
        %v352 = vld [vmem:[%s238 + $0x8] sm:$0xff]
        %v353 = vld [vmem:[%s238 + $0x10] sm:$0xff]
        %v354 = vld [vmem:[%s238 + $0x18] sm:$0xff]
        %v355 = vld [vmem:[%s238 + $0x20] sm:$0xff]
        %v356 = vld [vmem:[%s238 + $0x28] sm:$0xff]
        %v357 = vld [vmem:[%s238 + $0x30] sm:$0xff]
        %v358 = vld [vmem:[%s238 + $0x38] sm:$0xff]
        %v359 = vld [vmem:[%s238 + $0x40] sm:$0xff]
        %v360 = vld [vmem:[%s238 + $0x48] sm:$0xff]
        %v361 = vld [vmem:[%s238 + $0x50] sm:$0xff]
        %v362 = vld [vmem:[%s238 + $0x58] sm:$0xff]
        %v363 = vld [vmem:[%s238 + $0x60] sm:$0xff]
        %v364 = vld [vmem:[%s238 + $0x68] sm:$0xff]
        %v365 = vld [vmem:[%s238 + $0x70] sm:$0xff]
        %v366 = vld [vmem:[%s238 + $0x78] sm:$0xff]
        %v367 = vld [vmem:[%s238 + $0x80] sm:$0xff]
        %v368 = vld [vmem:[%s238 + $0x88] sm:$0xff]
        %v369 = vld [vmem:[%s238 + $0x90] sm:$0xff]
        %v370 = vld [vmem:[%s238 + $0x98] sm:$0xff]
        %v371 = vld [vmem:[%s238 + $0xa0] sm:$0xff]
        %v372 = vld [vmem:[%s238 + $0xa8] sm:$0xff]
        %v373 = vld [vmem:[%s238 + $0xb0] sm:$0xff]
        %v374 = vld [vmem:[%s238 + $0xb8] sm:$0xff]
        %v375 = vld [vmem:[%s238 + $0xc0] sm:$0xff]
        %v376 = vld [vmem:[%s238 + $0xc8] sm:$0xff]
        %v377 = vld [vmem:[%s238 + $0xd0] sm:$0xff]
        %v378 = vld [vmem:[%s238 + $0xd8] sm:$0xff]
        %v379 = vld [vmem:[%s238 + $0xe0] sm:$0xff]
        %v380 = vld [vmem:[%s238 + $0xe8] sm:$0xff]
        %v381 = vld [vmem:[%s238 + $0xf0] sm:$0xff]
        %v382 = vld [vmem:[%s238 + $0xf8] sm:$0xff]
        %v383 = vld [vmem:[%s238 + $0x100] sm:$0xff]
        %v384 = vld [vmem:[%s238 + $0x108] sm:$0xff]
        %v385 = vld [vmem:[%s238 + $0x110] sm:$0xff]
        %v386 = vld [vmem:[%s238 + $0x118] sm:$0xff]
        %v387 = vld [vmem:[%s238 + $0x120] sm:$0xff]
        %v388 = vld [vmem:[%s238 + $0x128] sm:$0xff]
        %v389 = vld [vmem:[%s238 + $0x130] sm:$0xff]
        %v390 = vld [vmem:[%s238 + $0x138] sm:$0xff]
        %v391 = vld [vmem:[%s238 + $0x140] sm:$0xff]
        %v392 = vld [vmem:[%s238 + $0x148] sm:$0xff]
        %v393 = vld [vmem:[%s238 + $0x150] sm:$0xff]
        %v394 = vld [vmem:[%s238 + $0x158] sm:$0xff]
        %v395 = vld [vmem:[%s238 + $0x160] sm:$0xff]
        %v396 = vld [vmem:[%s238 + $0x168] sm:$0xff]
        %v397 = vld [vmem:[%s238 + $0x170] sm:$0xff]
        %v398 = vld [vmem:[%s238 + $0x178] sm:$0xff]
        %v399 = vld [vmem:[%s238 + $0x180] sm:$0xff]
        %v400 = vld [vmem:[%s238 + $0x188] sm:$0xff]
        %v401 = vld [vmem:[%s238 + $0x190] sm:$0xff]
        %v402 = vld [vmem:[%s238 + $0x198] sm:$0xff]
        %v403 = vld [vmem:[%s238 + $0x1a0] sm:$0xff]
        %v404 = vld [vmem:[%s238 + $0x1a8] sm:$0xff]
        %v405 = vld [vmem:[%s238 + $0x1b0] sm:$0xff]
        %v406 = vld [vmem:[%s238 + $0x1b8] sm:$0xff]
        %v407 = vld [vmem:[%s238 + $0x1c0] sm:$0xff]
        %v408 = vld [vmem:[%s238 + $0x1c8] sm:$0xff]
        %v409 = vld [vmem:[%s238 + $0x1d0] sm:$0xff]
        %v410 = vld [vmem:[%s238 + $0x1d8] sm:$0xff]
        %v411 = vld [vmem:[%s238 + $0x1e0] sm:$0xff]
        %v412 = vld [vmem:[%s238 + $0x1e8] sm:$0xff]
        %v413 = vld [vmem:[%s238 + $0x1f0] sm:$0xff]
        %v414 = vld [vmem:[%s238 + $0x1f8] sm:$0xff]
        %v415 = vld [vmem:[%s238 + $0x200] sm:$0xff]
        %v416 = vld [vmem:[%s238 + $0x208] sm:$0xff]
        %v417 = vld [vmem:[%s238 + $0x210] sm:$0xff]
        %v418 = vld [vmem:[%s238 + $0x218] sm:$0xff]
        %v419 = vld [vmem:[%s238 + $0x220] sm:$0xff]
        %v420 = vld [vmem:[%s238 + $0x228] sm:$0xff]
        %v421 = vld [vmem:[%s238 + $0x230] sm:$0xff]
        %v422 = vld [vmem:[%s238 + $0x238] sm:$0xff]
        %v423 = vld [vmem:[%s238 + $0x240] sm:$0xff]
        %v424 = vld [vmem:[%s238 + $0x248] sm:$0xff]
        %v425 = vld [vmem:[%s238 + $0x250] sm:$0xff]
        %v426 = vld [vmem:[%s238 + $0x258] sm:$0xff]
        %v427 = vld [vmem:[%s238 + $0x260] sm:$0xff]
        %v428 = vld [vmem:[%s238 + $0x268] sm:$0xff]
        %v429 = vld [vmem:[%s238 + $0x270] sm:$0xff]
        %v430 = vld [vmem:[%s238 + $0x278] sm:$0xff]
        %v431 = vld [vmem:[%s238 + $0x280] sm:$0xff]
        %v432 = vld [vmem:[%s238 + $0x288] sm:$0xff]
        %v433 = vld [vmem:[%s238 + $0x290] sm:$0xff]
        %v434 = vld [vmem:[%s238 + $0x298] sm:$0xff]
        %v435 = vld [vmem:[%s238 + $0x2a0] sm:$0xff]
        %v436 = vld [vmem:[%s238 + $0x2a8] sm:$0xff]
        %v437 = vld [vmem:[%s238 + $0x2b0] sm:$0xff]
        %v438 = vld [vmem:[%s238 + $0x2b8] sm:$0xff]
        %v439 = vld [vmem:[%s238 + $0x2c0] sm:$0xff]
        %v440 = vld [vmem:[%s238 + $0x2c8] sm:$0xff]
        %v441 = vld [vmem:[%s238 + $0x2d0] sm:$0xff]
        %v442 = vld [vmem:[%s238 + $0x2d8] sm:$0xff]
        %v443 = vld [vmem:[%s238 + $0x2e0] sm:$0xff]
        %v444 = vld [vmem:[%s238 + $0x2e8] sm:$0xff]
        %v445 = vld [vmem:[%s238 + $0x2f0] sm:$0xff]
        %v446 = vld [vmem:[%s238 + $0x2f8] sm:$0xff]
        %v447 = vld [vmem:[%s238 + $0x300] sm:$0xff]
        %v448 = vld [vmem:[%s238 + $0x308] sm:$0xff]
        %v449 = vld [vmem:[%s238 + $0x310] sm:$0xff]
        %v450 = vld [vmem:[%s238 + $0x318] sm:$0xff]
        %v451 = vld [vmem:[%s238 + $0x320] sm:$0xff]
        %v452 = vld [vmem:[%s238 + $0x328] sm:$0xff]
        %v453 = vld [vmem:[%s238 + $0x330] sm:$0xff]
        %v454 = vld [vmem:[%s238 + $0x338] sm:$0xff]
        %v455 = vld [vmem:[%s238 + $0x340] sm:$0xff]
        %v456 = vld [vmem:[%s238 + $0x348] sm:$0xff]
        %v457 = vld [vmem:[%s238 + $0x350] sm:$0xff]
        %v458 = vld [vmem:[%s238 + $0x358] sm:$0xff]
        %v459 = vld [vmem:[%s238 + $0x360] sm:$0xff]
        %v460 = vld [vmem:[%s238 + $0x368] sm:$0xff]
        %v461 = vld [vmem:[%s238 + $0x370] sm:$0xff]
        %v462 = vld [vmem:[%s238 + $0x378] sm:$0xff]
        %v463 = vld [vmem:[%s238 + $0x380] sm:$0xff]
        %v464 = vld [vmem:[%s238 + $0x388] sm:$0xff]
        %v465 = vld [vmem:[%s238 + $0x390] sm:$0xff]
        %v466 = vld [vmem:[%s238 + $0x398] sm:$0xff]
        %v467 = vld [vmem:[%s238 + $0x3a0] sm:$0xff]
        %v468 = vld [vmem:[%s238 + $0x3a8] sm:$0xff]
        %v469 = vld [vmem:[%s238 + $0x3b0] sm:$0xff]
        %v470 = vld [vmem:[%s238 + $0x3b8] sm:$0xff]
        %v471 = vld [vmem:[%s238 + $0x3c0] sm:$0xff]
        %v472 = vld [vmem:[%s238 + $0x3c8] sm:$0xff]
        %v473 = vld [vmem:[%s238 + $0x3d0] sm:$0xff]
        %v474 = vld [vmem:[%s238 + $0x3d8] sm:$0xff]
        %v475 = vld [vmem:[%s238 + $0x3e0] sm:$0xff]
        %v476 = vld [vmem:[%s238 + $0x3e8] sm:$0xff]
        %v477 = vld [vmem:[%s238 + $0x3f0] sm:$0xff]
        %v478 = vld [vmem:[%s238 + $0x3f8] sm:$0xff]
        %479 = vmatprep.subr.mxu0 %v352
        %480 = vmatpush1.msra.mxu0 %v351
        %481 = vmatprep.subr.mxu0 %v356
        %482 = vmatpush1.msra.mxu0 %v355
        %483 = vmatprep.subr.mxu0 %v360
        %484 = vmatpush1.msra.mxu0 %v359
        %485 = vmatprep.subr.mxu0 %v364
        %486 = vmatpush1.msra.mxu0 %v363
        %487 = vmatprep.subr.mxu0 %v368
        %488 = vmatpush1.msra.mxu0 %v367
        %489 = vmatprep.subr.mxu0 %v372
        %490 = vmatpush1.msra.mxu0 %v371
        %491 = vmatprep.subr.mxu0 %v376
        %492 = vmatpush1.msra.mxu0 %v375
        %493 = vmatprep.subr.mxu0 %v380
        %494 = vmatpush1.msra.mxu0 %v379
        %495 = vmatprep.subr.mxu0 %v384
        %496 = vmatpush1.msra.mxu0 %v383
        %497 = vmatprep.subr.mxu0 %v388
        %498 = vmatpush1.msra.mxu0 %v387
        %499 = vmatprep.subr.mxu0 %v392
        %500 = vmatpush1.msra.mxu0 %v391
        %501 = vmatprep.subr.mxu0 %v396
        %502 = vmatpush1.msra.mxu0 %v395
        %503 = vmatprep.subr.mxu0 %v400
        %504 = vmatpush1.msra.mxu0 %v399
        %505 = vmatprep.subr.mxu0 %v404
        %506 = vmatpush1.msra.mxu0 %v403
        %507 = vmatprep.subr.mxu0 %v408
        %508 = vmatpush1.msra.mxu0 %v407
        %509 = vmatprep.subr.mxu0 %v412
        %510 = vmatpush1.msra.mxu0 %v411
        %511 = vmatprep.subr.mxu0 %v416
        %512 = vmatpush1.msra.mxu0 %v415
        %513 = vmatprep.subr.mxu0 %v420
        %514 = vmatpush1.msra.mxu0 %v419
        %515 = vmatprep.subr.mxu0 %v424
        %516 = vmatpush1.msra.mxu0 %v423
        %517 = vmatprep.subr.mxu0 %v428
        %518 = vmatpush1.msra.mxu0 %v427
        %519 = vmatprep.subr.mxu0 %v432
        %520 = vmatpush1.msra.mxu0 %v431
        %521 = vmatprep.subr.mxu0 %v436
        %522 = vmatpush1.msra.mxu0 %v435
        %523 = vmatprep.subr.mxu0 %v440
        %524 = vmatpush1.msra.mxu0 %v439
        %525 = vmatprep.subr.mxu0 %v444
        %526 = vmatpush1.msra.mxu0 %v443
        %527 = vmatprep.subr.mxu0 %v448
        %528 = vmatpush1.msra.mxu0 %v447
        %529 = vmatprep.subr.mxu0 %v452
        %530 = vmatpush1.msra.mxu0 %v451
        %531 = vmatprep.subr.mxu0 %v456
        %532 = vmatpush1.msra.mxu0 %v455
        %533 = vmatprep.subr.mxu0 %v460
        %534 = vmatpush1.msra.mxu0 %v459
        %535 = vmatprep.subr.mxu0 %v464
        %536 = vmatpush1.msra.mxu0 %v463
        %537 = vmatprep.subr.mxu0 %v468
        %538 = vmatpush1.msra.mxu0 %v467
        %539 = vmatprep.subr.mxu0 %v472
        %540 = vmatpush1.msra.mxu0 %v471
        %541 = vmatprep.subr.mxu0 %v476
        %542 = vmatpush1.msra.mxu0 %v475
        %543 = vmatprep.mubr.f32.mxu0 %v320
        %544 = vmatmul.mubr.f32.gmra.mrb[0].mxu0 %v319
        %v545 = vpop.f32.mrb[0].mxu0
        %v546 = vadd.f32 0.0, %v545
        %v547 = vpop.f32.mrb[0].mxu0
        %v548 = vadd.f32 0.0, %v547
        %549 = vmatprep.mubr.f32.mxu0 %v322
        %550 = vmatmul.mubr.f32.gmra.mrb[0].mxu0 %v321
        %v551 = vpop.f32.mrb[0].mxu0
        %v552 = vadd.f32 0.0, %v551
        %v553 = vpop.f32.mrb[0].mxu0
        %v554 = vadd.f32 0.0, %v553
        %555 = vmatprep.mubr.f32.mxu0 %v324
        %556 = vmatmul.mubr.f32.gmra.mrb[0].mxu0 %v323
        %v557 = vpop.f32.mrb[0].mxu0
        %v558 = vadd.f32 0.0, %v557
        %v559 = vpop.f32.mrb[0].mxu0
        %v560 = vadd.f32 0.0, %v559
        %561 = vmatprep.mubr.f32.mxu0 %v326
        %562 = vmatmul.mubr.f32.gmra.mrb[0].mxu0 %v325
        %v563 = vpop.f32.mrb[0].mxu0
        %v564 = vadd.f32 0.0, %v563
        %v565 = vpop.f32.mrb[0].mxu0
        %v566 = vadd.f32 0.0, %v565
        %567 = vmatprep.mubr.f32.mxu0 %v328
        %568 = vmatmul.mubr.f32.gmra.mrb[0].mxu0 %v327
        %v569 = vpop.f32.mrb[0].mxu0
        %v570 = vadd.f32 0.0, %v569
        %v571 = vpop.f32.mrb[0].mxu0
        %v572 = vadd.f32 0.0, %v571
        %573 = vmatprep.mubr.f32.mxu0 %v330
        %574 = vmatmul.mubr.f32.gmra.mrb[0].mxu0 %v329
        %v575 = vpop.f32.mrb[0].mxu0
        %v576 = vadd.f32 0.0, %v575
        %v577 = vpop.f32.mrb[0].mxu0
        %v578 = vadd.f32 0.0, %v577
        %579 = vmatprep.mubr.f32.mxu0 %v332
        %580 = vmatmul.mubr.f32.gmra.mrb[0].mxu0 %v331
        %v581 = vpop.f32.mrb[0].mxu0
        %v582 = vadd.f32 0.0, %v581
        %v583 = vpop.f32.mrb[0].mxu0
        %v584 = vadd.f32 0.0, %v583
        %585 = vmatprep.mubr.f32.mxu0 %v334
        %586 = vmatmul.mubr.f32.gmra.mrb[0].mxu0 %v333
        %v587 = vpop.f32.mrb[0].mxu0
        %v588 = vadd.f32 0.0, %v587
        %v589 = vpop.f32.mrb[0].mxu0
        %v590 = vadd.f32 0.0, %v589
        %591 = vmatprep.mubr.f32.mxu0 %v336
        %592 = vmatmul.mubr.f32.gmra.mrb[0].mxu0 %v335
        %v593 = vpop.f32.mrb[0].mxu0
        %v594 = vadd.f32 0.0, %v593
        %v595 = vpop.f32.mrb[0].mxu0
        %v596 = vadd.f32 0.0, %v595
        %597 = vmatprep.mubr.f32.mxu0 %v338
        %598 = vmatmul.mubr.f32.gmra.mrb[0].mxu0 %v337
        %v599 = vpop.f32.mrb[0].mxu0
        %v600 = vadd.f32 0.0, %v599
        %v601 = vpop.f32.mrb[0].mxu0
        %v602 = vadd.f32 0.0, %v601
        %603 = vmatprep.mubr.f32.mxu0 %v340
        %604 = vmatmul.mubr.f32.gmra.mrb[0].mxu0 %v339
        %v605 = vpop.f32.mrb[0].mxu0
        %v606 = vadd.f32 0.0, %v605
        %v607 = vpop.f32.mrb[0].mxu0
        %v608 = vadd.f32 0.0, %v607
        %609 = vmatprep.mubr.f32.mxu0 %v342
        %610 = vmatmul.mubr.f32.gmra.mrb[0].mxu0 %v341
        %v611 = vpop.f32.mrb[0].mxu0
        %v612 = vadd.f32 0.0, %v611
        %v613 = vpop.f32.mrb[0].mxu0
        %v614 = vadd.f32 0.0, %v613
        %615 = vmatprep.mubr.f32.mxu0 %v344
        %616 = vmatmul.mubr.f32.gmra.mrb[0].mxu0 %v343
        %v617 = vpop.f32.mrb[0].mxu0
        %v618 = vadd.f32 0.0, %v617
        %v619 = vpop.f32.mrb[0].mxu0
        %v620 = vadd.f32 0.0, %v619
        %621 = vmatprep.mubr.f32.mxu0 %v346
        %622 = vmatmul.mubr.f32.gmra.mrb[0].mxu0 %v345
        %v623 = vpop.f32.mrb[0].mxu0
        %v624 = vadd.f32 0.0, %v623
        %v625 = vpop.f32.mrb[0].mxu0
        %v626 = vadd.f32 0.0, %v625
        %627 = vmatprep.mubr.f32.mxu0 %v348
        %628 = vmatmul.mubr.f32.gmra.mrb[0].mxu0 %v347
        %v629 = vpop.f32.mrb[0].mxu0
        %v630 = vadd.f32 0.0, %v629
        %v631 = vpop.f32.mrb[0].mxu0
        %v632 = vadd.f32 0.0, %v631
        %633 = vmatprep.mubr.f32.mxu0 %v350
        %634 = vmatmul.mubr.f32.gmra.mrb[0].mxu0 %v349
        %v635 = vpop.f32.mrb[0].mxu0
        %v636 = vadd.f32 0.0, %v635
        %v637 = vpop.f32.mrb[0].mxu0
        %v638 = vadd.f32 0.0, %v637
        %639 = vdwg.mxu0
        %640 = vmatprep.subr.mxu0 %v354
        %641 = vmatpush1.msra.mxu0 %v353
        %642 = vmatprep.subr.mxu0 %v358
        %643 = vmatpush1.msra.mxu0 %v357
        %644 = vmatprep.subr.mxu0 %v362
        %645 = vmatpush1.msra.mxu0 %v361
        %646 = vmatprep.subr.mxu0 %v366
        %647 = vmatpush1.msra.mxu0 %v365
        %648 = vmatprep.subr.mxu0 %v370
        %649 = vmatpush1.msra.mxu0 %v369
        %650 = vmatprep.subr.mxu0 %v374
        %651 = vmatpush1.msra.mxu0 %v373
        %652 = vmatprep.subr.mxu0 %v378
        %653 = vmatpush1.msra.mxu0 %v377
        %654 = vmatprep.subr.mxu0 %v382
        %655 = vmatpush1.msra.mxu0 %v381
        %656 = vmatprep.subr.mxu0 %v386
        %657 = vmatpush1.msra.mxu0 %v385
        %658 = vmatprep.subr.mxu0 %v390
        %659 = vmatpush1.msra.mxu0 %v389
        %660 = vmatprep.subr.mxu0 %v394
        %661 = vmatpush1.msra.mxu0 %v393
        %662 = vmatprep.subr.mxu0 %v398
        %663 = vmatpush1.msra.mxu0 %v397
        %664 = vmatprep.subr.mxu0 %v402
        %665 = vmatpush1.msra.mxu0 %v401
        %666 = vmatprep.subr.mxu0 %v406
        %667 = vmatpush1.msra.mxu0 %v405
        %668 = vmatprep.subr.mxu0 %v410
        %669 = vmatpush1.msra.mxu0 %v409
        %670 = vmatprep.subr.mxu0 %v414
        %671 = vmatpush1.msra.mxu0 %v413
        %672 = vmatprep.subr.mxu0 %v418
        %673 = vmatpush1.msra.mxu0 %v417
        %674 = vmatprep.subr.mxu0 %v422
        %675 = vmatpush1.msra.mxu0 %v421
        %676 = vmatprep.subr.mxu0 %v426
        %677 = vmatpush1.msra.mxu0 %v425
        %678 = vmatprep.subr.mxu0 %v430
        %679 = vmatpush1.msra.mxu0 %v429
        %680 = vmatprep.subr.mxu0 %v434
        %681 = vmatpush1.msra.mxu0 %v433
        %682 = vmatprep.subr.mxu0 %v438
        %683 = vmatpush1.msra.mxu0 %v437
        %684 = vmatprep.subr.mxu0 %v442
        %685 = vmatpush1.msra.mxu0 %v441
        %686 = vmatprep.subr.mxu0 %v446
        %687 = vmatpush1.msra.mxu0 %v445
        %688 = vmatprep.subr.mxu0 %v450
        %689 = vmatpush1.msra.mxu0 %v449
        %690 = vmatprep.subr.mxu0 %v454
        %691 = vmatpush1.msra.mxu0 %v453
        %692 = vmatprep.subr.mxu0 %v458
        %693 = vmatpush1.msra.mxu0 %v457
        %694 = vmatprep.subr.mxu0 %v462
        %695 = vmatpush1.msra.mxu0 %v461
        %696 = vmatprep.subr.mxu0 %v466
        %697 = vmatpush1.msra.mxu0 %v465
        %698 = vmatprep.subr.mxu0 %v470
        %699 = vmatpush1.msra.mxu0 %v469
        %700 = vmatprep.subr.mxu0 %v474
        %701 = vmatpush1.msra.mxu0 %v473
        %702 = vmatprep.subr.mxu0 %v478
        %703 = vmatpush1.msra.mxu0 %v477
        %704 = vmatprep.mubr.f32.mxu0 %v320
        %705 = vmatmul.mubr.f32.gmra.mrb[0].mxu0 %v319
        %v706 = vpop.f32.mrb[0].mxu0
        %v707 = vadd.f32 0.0, %v706
        %v708 = vpop.f32.mrb[0].mxu0
        %v709 = vadd.f32 0.0, %v708
        %710 = vmatprep.mubr.f32.mxu0 %v322
        %711 = vmatmul.mubr.f32.gmra.mrb[0].mxu0 %v321
        %v712 = vpop.f32.mrb[0].mxu0
        %v713 = vadd.f32 0.0, %v712
        %v714 = vpop.f32.mrb[0].mxu0
        %v715 = vadd.f32 0.0, %v714
        %716 = vmatprep.mubr.f32.mxu0 %v324
        %717 = vmatmul.mubr.f32.gmra.mrb[0].mxu0 %v323
        %v718 = vpop.f32.mrb[0].mxu0
        %v719 = vadd.f32 0.0, %v718
        %v720 = vpop.f32.mrb[0].mxu0
        %v721 = vadd.f32 0.0, %v720
        %722 = vmatprep.mubr.f32.mxu0 %v326
        %723 = vmatmul.mubr.f32.gmra.mrb[0].mxu0 %v325
        %v724 = vpop.f32.mrb[0].mxu0
        %v725 = vadd.f32 0.0, %v724
        %v726 = vpop.f32.mrb[0].mxu0
        %v727 = vadd.f32 0.0, %v726
        %728 = vmatprep.mubr.f32.mxu0 %v328
        %729 = vmatmul.mubr.f32.gmra.mrb[0].mxu0 %v327
        %v730 = vpop.f32.mrb[0].mxu0
        %v731 = vadd.f32 0.0, %v730
        %v732 = vpop.f32.mrb[0].mxu0
        %v733 = vadd.f32 0.0, %v732
        %734 = vmatprep.mubr.f32.mxu0 %v330
        %735 = vmatmul.mubr.f32.gmra.mrb[0].mxu0 %v329
        %v736 = vpop.f32.mrb[0].mxu0
        %v737 = vadd.f32 0.0, %v736
        %v738 = vpop.f32.mrb[0].mxu0
        %v739 = vadd.f32 0.0, %v738
        %740 = vmatprep.mubr.f32.mxu0 %v332
        %741 = vmatmul.mubr.f32.gmra.mrb[0].mxu0 %v331
        %v742 = vpop.f32.mrb[0].mxu0
        %v743 = vadd.f32 0.0, %v742
        %v744 = vpop.f32.mrb[0].mxu0
        %v745 = vadd.f32 0.0, %v744
        %746 = vmatprep.mubr.f32.mxu0 %v334
        %747 = vmatmul.mubr.f32.gmra.mrb[0].mxu0 %v333
        %v748 = vpop.f32.mrb[0].mxu0
        %v749 = vadd.f32 0.0, %v748
        %v750 = vpop.f32.mrb[0].mxu0
        %v751 = vadd.f32 0.0, %v750
        %752 = vmatprep.mubr.f32.mxu0 %v336
        %753 = vmatmul.mubr.f32.gmra.mrb[0].mxu0 %v335
        %v754 = vpop.f32.mrb[0].mxu0
        %v755 = vadd.f32 0.0, %v754
        %v756 = vpop.f32.mrb[0].mxu0
        %v757 = vadd.f32 0.0, %v756
        %758 = vmatprep.mubr.f32.mxu0 %v338
        %759 = vmatmul.mubr.f32.gmra.mrb[0].mxu0 %v337
        %v760 = vpop.f32.mrb[0].mxu0
        %v761 = vadd.f32 0.0, %v760
        %v762 = vpop.f32.mrb[0].mxu0
        %v763 = vadd.f32 0.0, %v762
        %764 = vmatprep.mubr.f32.mxu0 %v340
        %765 = vmatmul.mubr.f32.gmra.mrb[0].mxu0 %v339
        %v766 = vpop.f32.mrb[0].mxu0
        %v767 = vadd.f32 0.0, %v766
        %v768 = vpop.f32.mrb[0].mxu0
        %v769 = vadd.f32 0.0, %v768
        %770 = vmatprep.mubr.f32.mxu0 %v342
        %771 = vmatmul.mubr.f32.gmra.mrb[0].mxu0 %v341
        %v772 = vpop.f32.mrb[0].mxu0
        %v773 = vadd.f32 0.0, %v772
        %v774 = vpop.f32.mrb[0].mxu0
        %v775 = vadd.f32 0.0, %v774
        %776 = vmatprep.mubr.f32.mxu0 %v344
        %777 = vmatmul.mubr.f32.gmra.mrb[0].mxu0 %v343
        %v778 = vpop.f32.mrb[0].mxu0
        %v779 = vadd.f32 0.0, %v778
        %v780 = vpop.f32.mrb[0].mxu0
        %v781 = vadd.f32 0.0, %v780
        %782 = vmatprep.mubr.f32.mxu0 %v346
        %783 = vmatmul.mubr.f32.gmra.mrb[0].mxu0 %v345
        %v784 = vpop.f32.mrb[0].mxu0
        %v785 = vadd.f32 0.0, %v784
        %v786 = vpop.f32.mrb[0].mxu0
        %v787 = vadd.f32 0.0, %v786
        %788 = vmatprep.mubr.f32.mxu0 %v348
        %789 = vmatmul.mubr.f32.gmra.mrb[0].mxu0 %v347
        %v790 = vpop.f32.mrb[0].mxu0
        %v791 = vadd.f32 0.0, %v790
        %v792 = vpop.f32.mrb[0].mxu0
        %v793 = vadd.f32 0.0, %v792
        %794 = vmatprep.mubr.f32.mxu0 %v350
        %795 = vmatmul.mubr.f32.gmra.mrb[0].mxu0 %v349
        %v796 = vpop.f32.mrb[0].mxu0
        %v797 = vadd.f32 0.0, %v796
        %v798 = vpop.f32.mrb[0].mxu0
        %v799 = vadd.f32 0.0, %v798
        %800 = vdwg.mxu0
        %v801 = vxor.u32 %v546, 2147483648
        %v802 = vxor.u32 %v548, 2147483648
        %v803 = vxor.u32 %v552, 2147483648
        %v804 = vxor.u32 %v554, 2147483648
        %v805 = vxor.u32 %v558, 2147483648
        %v806 = vxor.u32 %v560, 2147483648
        %v807 = vxor.u32 %v564, 2147483648
        %v808 = vxor.u32 %v566, 2147483648
        %v809 = vxor.u32 %v570, 2147483648
        %v810 = vxor.u32 %v572, 2147483648
        %v811 = vxor.u32 %v576, 2147483648
        %v812 = vxor.u32 %v578, 2147483648
        %v813 = vxor.u32 %v582, 2147483648
        %v814 = vxor.u32 %v584, 2147483648
        %v815 = vxor.u32 %v588, 2147483648
        %v816 = vxor.u32 %v590, 2147483648
        %v817 = vxor.u32 %v594, 2147483648
        %v818 = vxor.u32 %v596, 2147483648
        %v819 = vxor.u32 %v600, 2147483648
        %v820 = vxor.u32 %v602, 2147483648
        %v821 = vxor.u32 %v606, 2147483648
        %v822 = vxor.u32 %v608, 2147483648
        %v823 = vxor.u32 %v612, 2147483648
        %v824 = vxor.u32 %v614, 2147483648
        %v825 = vxor.u32 %v618, 2147483648
        %v826 = vxor.u32 %v620, 2147483648
        %v827 = vxor.u32 %v624, 2147483648
        %v828 = vxor.u32 %v626, 2147483648
        %v829 = vxor.u32 %v630, 2147483648
        %v830 = vxor.u32 %v632, 2147483648
        %v831 = vxor.u32 %v636, 2147483648
        %v832 = vxor.u32 %v638, 2147483648
        %v833 = vmul.f32 %v801, 1.442695
        %v834 = vpow.pop %v833
        %v835 = vmul.f32 %v802, 1.442695
        %v836 = vpow.pop %v835
        %v837 = vmul.f32 %v803, 1.442695
        %v838 = vpow.pop %v837
        %v839 = vmul.f32 %v804, 1.442695
        %v840 = vpow.pop %v839
        %v841 = vmul.f32 %v805, 1.442695
        %v842 = vpow.pop %v841
        %v843 = vmul.f32 %v806, 1.442695
        %v844 = vpow.pop %v843
        %v845 = vmul.f32 %v807, 1.442695
        %v846 = vpow.pop %v845
        %v847 = vmul.f32 %v808, 1.442695
        %v848 = vpow.pop %v847
        %v849 = vmul.f32 %v809, 1.442695
        %v850 = vpow.pop %v849
        %v851 = vmul.f32 %v810, 1.442695
        %v852 = vpow.pop %v851
        %v853 = vmul.f32 %v811, 1.442695
        %v854 = vpow.pop %v853
        %v855 = vmul.f32 %v812, 1.442695
        %v856 = vpow.pop %v855
        %v857 = vmul.f32 %v813, 1.442695
        %v858 = vpow.pop %v857
        %v859 = vmul.f32 %v814, 1.442695
        %v860 = vpow.pop %v859
        %v861 = vmul.f32 %v815, 1.442695
        %v862 = vpow.pop %v861
        %v863 = vmul.f32 %v816, 1.442695
        %v864 = vpow.pop %v863
        %v865 = vmul.f32 %v817, 1.442695
        %v866 = vpow.pop %v865
        %v867 = vmul.f32 %v818, 1.442695
        %v868 = vpow.pop %v867
        %v869 = vmul.f32 %v819, 1.442695
        %v870 = vpow.pop %v869
        %v871 = vmul.f32 %v820, 1.442695
        %v872 = vpow.pop %v871
        %v873 = vmul.f32 %v821, 1.442695
        %v874 = vpow.pop %v873
        %v875 = vmul.f32 %v822, 1.442695
        %v876 = vpow.pop %v875
        %v877 = vmul.f32 %v823, 1.442695
        %v878 = vpow.pop %v877
        %v879 = vmul.f32 %v824, 1.442695
        %v880 = vpow.pop %v879
        %v881 = vmul.f32 %v825, 1.442695
        %v882 = vpow.pop %v881
        %v883 = vmul.f32 %v826, 1.442695
        %v884 = vpow.pop %v883
        %v885 = vmul.f32 %v827, 1.442695
        %v886 = vpow.pop %v885
        %v887 = vmul.f32 %v828, 1.442695
        %v888 = vpow.pop %v887
        %v889 = vmul.f32 %v829, 1.442695
        %v890 = vpow.pop %v889
        %v891 = vmul.f32 %v830, 1.442695
        %v892 = vpow.pop %v891
        %v893 = vmul.f32 %v831, 1.442695
        %v894 = vpow.pop %v893
        %v895 = vmul.f32 %v832, 1.442695
        %v896 = vpow.pop %v895
        %v897 = vadd.f32 %v834, 1.0
        %v898 = vadd.f32 %v836, 1.0
        %v899 = vadd.f32 %v838, 1.0
        %v900 = vadd.f32 %v840, 1.0
        %v901 = vadd.f32 %v842, 1.0
        %v902 = vadd.f32 %v844, 1.0
        %v903 = vadd.f32 %v846, 1.0
        %v904 = vadd.f32 %v848, 1.0
        %v905 = vadd.f32 %v850, 1.0
        %v906 = vadd.f32 %v852, 1.0
        %v907 = vadd.f32 %v854, 1.0
        %v908 = vadd.f32 %v856, 1.0
        %v909 = vadd.f32 %v858, 1.0
        %v910 = vadd.f32 %v860, 1.0
        %v911 = vadd.f32 %v862, 1.0
        %v912 = vadd.f32 %v864, 1.0
        %v913 = vadd.f32 %v866, 1.0
        %v914 = vadd.f32 %v868, 1.0
        %v915 = vadd.f32 %v870, 1.0
        %v916 = vadd.f32 %v872, 1.0
        %v917 = vadd.f32 %v874, 1.0
        %v918 = vadd.f32 %v876, 1.0
        %v919 = vadd.f32 %v878, 1.0
        %v920 = vadd.f32 %v880, 1.0
        %v921 = vadd.f32 %v882, 1.0
        %v922 = vadd.f32 %v884, 1.0
        %v923 = vadd.f32 %v886, 1.0
        %v924 = vadd.f32 %v888, 1.0
        %v925 = vadd.f32 %v890, 1.0
        %v926 = vadd.f32 %v892, 1.0
        %v927 = vadd.f32 %v894, 1.0
        %v928 = vadd.f32 %v896, 1.0
        %v929 = vrcp.pop %v897
        %v930 = vmul.f32 1.0, %v929
        %v931 = vrcp.pop %v898
        %v932 = vmul.f32 1.0, %v931
        %v933 = vrcp.pop %v899
        %v934 = vmul.f32 1.0, %v933
        %v935 = vrcp.pop %v900
        %v936 = vmul.f32 1.0, %v935
        %v937 = vrcp.pop %v901
        %v938 = vmul.f32 1.0, %v937
        %v939 = vrcp.pop %v902
        %v940 = vmul.f32 1.0, %v939
        %v941 = vrcp.pop %v903
        %v942 = vmul.f32 1.0, %v941
        %v943 = vrcp.pop %v904
        %v944 = vmul.f32 1.0, %v943
        %v945 = vrcp.pop %v905
        %v946 = vmul.f32 1.0, %v945
        %v947 = vrcp.pop %v906
        %v948 = vmul.f32 1.0, %v947
        %v949 = vrcp.pop %v907
        %v950 = vmul.f32 1.0, %v949
        %v951 = vrcp.pop %v908
        %v952 = vmul.f32 1.0, %v951
        %v953 = vrcp.pop %v909
        %v954 = vmul.f32 1.0, %v953
        %v955 = vrcp.pop %v910
        %v956 = vmul.f32 1.0, %v955
        %v957 = vrcp.pop %v911
        %v958 = vmul.f32 1.0, %v957
        %v959 = vrcp.pop %v912
        %v960 = vmul.f32 1.0, %v959
        %v961 = vrcp.pop %v913
        %v962 = vmul.f32 1.0, %v961
        %v963 = vrcp.pop %v914
        %v964 = vmul.f32 1.0, %v963
        %v965 = vrcp.pop %v915
        %v966 = vmul.f32 1.0, %v965
        %v967 = vrcp.pop %v916
        %v968 = vmul.f32 1.0, %v967
        %v969 = vrcp.pop %v917
        %v970 = vmul.f32 1.0, %v969
        %v971 = vrcp.pop %v918
        %v972 = vmul.f32 1.0, %v971
        %v973 = vrcp.pop %v919
        %v974 = vmul.f32 1.0, %v973
        %v975 = vrcp.pop %v920
        %v976 = vmul.f32 1.0, %v975
        %v977 = vrcp.pop %v921
        %v978 = vmul.f32 1.0, %v977
        %v979 = vrcp.pop %v922
        %v980 = vmul.f32 1.0, %v979
        %v981 = vrcp.pop %v923
        %v982 = vmul.f32 1.0, %v981
        %v983 = vrcp.pop %v924
        %v984 = vmul.f32 1.0, %v983
        %v985 = vrcp.pop %v925
        %v986 = vmul.f32 1.0, %v985
        %v987 = vrcp.pop %v926
        %v988 = vmul.f32 1.0, %v987
        %v989 = vrcp.pop %v927
        %v990 = vmul.f32 1.0, %v989
        %v991 = vrcp.pop %v928
        %v992 = vmul.f32 1.0, %v991
        %v993 = vmul.f32 %v546, %v930
        %v994 = vmul.f32 %v548, %v932
        %v995 = vmul.f32 %v552, %v934
        %v996 = vmul.f32 %v554, %v936
        %v997 = vmul.f32 %v558, %v938
        %v998 = vmul.f32 %v560, %v940
        %v999 = vmul.f32 %v564, %v942
        %v1000 = vmul.f32 %v566, %v944
        %v1001 = vmul.f32 %v570, %v946
        %v1002 = vmul.f32 %v572, %v948
        %v1003 = vmul.f32 %v576, %v950
        %v1004 = vmul.f32 %v578, %v952
        %v1005 = vmul.f32 %v582, %v954
        %v1006 = vmul.f32 %v584, %v956
        %v1007 = vmul.f32 %v588, %v958
        %v1008 = vmul.f32 %v590, %v960
        %v1009 = vmul.f32 %v594, %v962
        %v1010 = vmul.f32 %v596, %v964
        %v1011 = vmul.f32 %v600, %v966
        %v1012 = vmul.f32 %v602, %v968
        %v1013 = vmul.f32 %v606, %v970
        %v1014 = vmul.f32 %v608, %v972
        %v1015 = vmul.f32 %v612, %v974
        %v1016 = vmul.f32 %v614, %v976
        %v1017 = vmul.f32 %v618, %v978
        %v1018 = vmul.f32 %v620, %v980
        %v1019 = vmul.f32 %v624, %v982
        %v1020 = vmul.f32 %v626, %v984
        %v1021 = vmul.f32 %v630, %v986
        %v1022 = vmul.f32 %v632, %v988
        %v1023 = vmul.f32 %v636, %v990
        %v1024 = vmul.f32 %v638, %v992
        %v1025 = vmul.f32 %v993, %v707
        %v1026 = vmul.f32 %v994, %v709
        %v1027 = vmul.f32 %v995, %v713
        %v1028 = vmul.f32 %v996, %v715
        %v1029 = vmul.f32 %v997, %v719
        %v1030 = vmul.f32 %v998, %v721
        %v1031 = vmul.f32 %v999, %v725
        %v1032 = vmul.f32 %v1000, %v727
        %v1033 = vmul.f32 %v1001, %v731
        %v1034 = vmul.f32 %v1002, %v733
        %v1035 = vmul.f32 %v1003, %v737
        %v1036 = vmul.f32 %v1004, %v739
        %v1037 = vmul.f32 %v1005, %v743
        %v1038 = vmul.f32 %v1006, %v745
        %v1039 = vmul.f32 %v1007, %v749
        %v1040 = vmul.f32 %v1008, %v751
        %v1041 = vmul.f32 %v1009, %v755
        %v1042 = vmul.f32 %v1010, %v757
        %v1043 = vmul.f32 %v1011, %v761
        %v1044 = vmul.f32 %v1012, %v763
        %v1045 = vmul.f32 %v1013, %v767
        %v1046 = vmul.f32 %v1014, %v769
        %v1047 = vmul.f32 %v1015, %v773
        %v1048 = vmul.f32 %v1016, %v775
        %v1049 = vmul.f32 %v1017, %v779
        %v1050 = vmul.f32 %v1018, %v781
        %v1051 = vmul.f32 %v1019, %v785
        %v1052 = vmul.f32 %v1020, %v787
        %v1053 = vmul.f32 %v1021, %v791
        %v1054 = vmul.f32 %v1022, %v793
        %v1055 = vmul.f32 %v1023, %v797
        %v1056 = vmul.f32 %v1024, %v799
        %v1057 = vld [vmem:[#allocation2] sm:$0xff]
        %v1058 = vld [vmem:[#allocation2 + $0x8] sm:$0xff]
        %v1059 = vld [vmem:[#allocation2 + $0x10] sm:$0xff]
        %v1060 = vld [vmem:[#allocation2 + $0x18] sm:$0xff]
        %v1061 = vld [vmem:[#allocation2 + $0x20] sm:$0xff]
        %v1062 = vld [vmem:[#allocation2 + $0x28] sm:$0xff]
        %v1063 = vld [vmem:[#allocation2 + $0x30] sm:$0xff]
        %v1064 = vld [vmem:[#allocation2 + $0x38] sm:$0xff]
        %v1065 = vld [vmem:[#allocation2 + $0x40] sm:$0xff]
        %v1066 = vld [vmem:[#allocation2 + $0x48] sm:$0xff]
        %v1067 = vld [vmem:[#allocation2 + $0x50] sm:$0xff]
        %v1068 = vld [vmem:[#allocation2 + $0x58] sm:$0xff]
        %v1069 = vld [vmem:[#allocation2 + $0x60] sm:$0xff]
        %v1070 = vld [vmem:[#allocation2 + $0x68] sm:$0xff]
        %v1071 = vld [vmem:[#allocation2 + $0x70] sm:$0xff]
        %v1072 = vld [vmem:[#allocation2 + $0x78] sm:$0xff]
        %v1073 = vld [vmem:[#allocation2 + $0x80] sm:$0xff]
        %v1074 = vld [vmem:[#allocation2 + $0x88] sm:$0xff]
        %v1075 = vld [vmem:[#allocation2 + $0x90] sm:$0xff]
        %v1076 = vld [vmem:[#allocation2 + $0x98] sm:$0xff]
        %v1077 = vld [vmem:[#allocation2 + $0xa0] sm:$0xff]
        %v1078 = vld [vmem:[#allocation2 + $0xa8] sm:$0xff]
        %v1079 = vld [vmem:[#allocation2 + $0xb0] sm:$0xff]
        %v1080 = vld [vmem:[#allocation2 + $0xb8] sm:$0xff]
        %v1081 = vld [vmem:[#allocation2 + $0xc0] sm:$0xff]
        %v1082 = vld [vmem:[#allocation2 + $0xc8] sm:$0xff]
        %v1083 = vld [vmem:[#allocation2 + $0xd0] sm:$0xff]
        %v1084 = vld [vmem:[#allocation2 + $0xd8] sm:$0xff]
        %v1085 = vld [vmem:[#allocation2 + $0xe0] sm:$0xff]
        %v1086 = vld [vmem:[#allocation2 + $0xe8] sm:$0xff]
        %v1087 = vld [vmem:[#allocation2 + $0xf0] sm:$0xff]
        %v1088 = vld [vmem:[#allocation2 + $0xf8] sm:$0xff]
        %v1089 = vld [vmem:[%s247] sm:$0xff]
        %v1090 = vld [vmem:[%s247 + $0x8] sm:$0xff]
        %v1091 = vld [vmem:[%s247 + $0x10] sm:$0xff]
        %v1092 = vld [vmem:[%s247 + $0x18] sm:$0xff]
        %v1093 = vld [vmem:[%s247 + $0x20] sm:$0xff]
        %v1094 = vld [vmem:[%s247 + $0x28] sm:$0xff]
        %v1095 = vld [vmem:[%s247 + $0x30] sm:$0xff]
        %v1096 = vld [vmem:[%s247 + $0x38] sm:$0xff]
        %v1097 = vld [vmem:[%s247 + $0x40] sm:$0xff]
        %v1098 = vld [vmem:[%s247 + $0x48] sm:$0xff]
        %v1099 = vld [vmem:[%s247 + $0x50] sm:$0xff]
        %v1100 = vld [vmem:[%s247 + $0x58] sm:$0xff]
        %v1101 = vld [vmem:[%s247 + $0x60] sm:$0xff]
        %v1102 = vld [vmem:[%s247 + $0x68] sm:$0xff]
        %v1103 = vld [vmem:[%s247 + $0x70] sm:$0xff]
        %v1104 = vld [vmem:[%s247 + $0x78] sm:$0xff]
        %v1105 = vld [vmem:[%s247 + $0x80] sm:$0xff]
        %v1106 = vld [vmem:[%s247 + $0x88] sm:$0xff]
        %v1107 = vld [vmem:[%s247 + $0x90] sm:$0xff]
        %v1108 = vld [vmem:[%s247 + $0x98] sm:$0xff]
        %v1109 = vld [vmem:[%s247 + $0xa0] sm:$0xff]
        %v1110 = vld [vmem:[%s247 + $0xa8] sm:$0xff]
        %v1111 = vld [vmem:[%s247 + $0xb0] sm:$0xff]
        %v1112 = vld [vmem:[%s247 + $0xb8] sm:$0xff]
        %v1113 = vld [vmem:[%s247 + $0xc0] sm:$0xff]
        %v1114 = vld [vmem:[%s247 + $0xc8] sm:$0xff]
        %v1115 = vld [vmem:[%s247 + $0xd0] sm:$0xff]
        %v1116 = vld [vmem:[%s247 + $0xd8] sm:$0xff]
        %v1117 = vld [vmem:[%s247 + $0xe0] sm:$0xff]
        %v1118 = vld [vmem:[%s247 + $0xe8] sm:$0xff]
        %v1119 = vld [vmem:[%s247 + $0xf0] sm:$0xff]
        %v1120 = vld [vmem:[%s247 + $0xf8] sm:$0xff]
        %v1121 = vld [vmem:[%s247 + $0x100] sm:$0xff]
        %v1122 = vld [vmem:[%s247 + $0x108] sm:$0xff]
        %v1123 = vld [vmem:[%s247 + $0x110] sm:$0xff]
        %v1124 = vld [vmem:[%s247 + $0x118] sm:$0xff]
        %v1125 = vld [vmem:[%s247 + $0x120] sm:$0xff]
        %v1126 = vld [vmem:[%s247 + $0x128] sm:$0xff]
        %v1127 = vld [vmem:[%s247 + $0x130] sm:$0xff]
        %v1128 = vld [vmem:[%s247 + $0x138] sm:$0xff]
        %v1129 = vld [vmem:[%s247 + $0x140] sm:$0xff]
        %v1130 = vld [vmem:[%s247 + $0x148] sm:$0xff]
        %v1131 = vld [vmem:[%s247 + $0x150] sm:$0xff]
        %v1132 = vld [vmem:[%s247 + $0x158] sm:$0xff]
        %v1133 = vld [vmem:[%s247 + $0x160] sm:$0xff]
        %v1134 = vld [vmem:[%s247 + $0x168] sm:$0xff]
        %v1135 = vld [vmem:[%s247 + $0x170] sm:$0xff]
        %v1136 = vld [vmem:[%s247 + $0x178] sm:$0xff]
        %v1137 = vld [vmem:[%s247 + $0x180] sm:$0xff]
        %v1138 = vld [vmem:[%s247 + $0x188] sm:$0xff]
        %v1139 = vld [vmem:[%s247 + $0x190] sm:$0xff]
        %v1140 = vld [vmem:[%s247 + $0x198] sm:$0xff]
        %v1141 = vld [vmem:[%s247 + $0x1a0] sm:$0xff]
        %v1142 = vld [vmem:[%s247 + $0x1a8] sm:$0xff]
        %v1143 = vld [vmem:[%s247 + $0x1b0] sm:$0xff]
        %v1144 = vld [vmem:[%s247 + $0x1b8] sm:$0xff]
        %v1145 = vld [vmem:[%s247 + $0x1c0] sm:$0xff]
        %v1146 = vld [vmem:[%s247 + $0x1c8] sm:$0xff]
        %v1147 = vld [vmem:[%s247 + $0x1d0] sm:$0xff]
        %v1148 = vld [vmem:[%s247 + $0x1d8] sm:$0xff]
        %v1149 = vld [vmem:[%s247 + $0x1e0] sm:$0xff]
        %v1150 = vld [vmem:[%s247 + $0x1e8] sm:$0xff]
        %v1151 = vld [vmem:[%s247 + $0x1f0] sm:$0xff]
        %v1152 = vld [vmem:[%s247 + $0x1f8] sm:$0xff]
        %1153 = vmatprep.subr.mxu0 %v1090
        %1154 = vmatpush1.msra.mxu0 %v1089
        %1155 = vmatprep.subr.mxu0 %v1092
        %1156 = vmatpush1.msra.mxu0 %v1091
        %1157 = vmatprep.subr.mxu0 %v1094
        %1158 = vmatpush1.msra.mxu0 %v1093
        %1159 = vmatprep.subr.mxu0 %v1096
        %1160 = vmatpush1.msra.mxu0 %v1095
        %1161 = vmatprep.subr.mxu0 %v1098
        %1162 = vmatpush1.msra.mxu0 %v1097
        %1163 = vmatprep.subr.mxu0 %v1100
        %1164 = vmatpush1.msra.mxu0 %v1099
        %1165 = vmatprep.subr.mxu0 %v1102
        %1166 = vmatpush1.msra.mxu0 %v1101
        %1167 = vmatprep.subr.mxu0 %v1104
        %1168 = vmatpush1.msra.mxu0 %v1103
        %1169 = vmatprep.subr.mxu0 %v1106
        %1170 = vmatpush1.msra.mxu0 %v1105
        %1171 = vmatprep.subr.mxu0 %v1108
        %1172 = vmatpush1.msra.mxu0 %v1107
        %1173 = vmatprep.subr.mxu0 %v1110
        %1174 = vmatpush1.msra.mxu0 %v1109
        %1175 = vmatprep.subr.mxu0 %v1112
        %1176 = vmatpush1.msra.mxu0 %v1111
        %1177 = vmatprep.subr.mxu0 %v1114
        %1178 = vmatpush1.msra.mxu0 %v1113
        %1179 = vmatprep.subr.mxu0 %v1116
        %1180 = vmatpush1.msra.mxu0 %v1115
        %1181 = vmatprep.subr.mxu0 %v1118
        %1182 = vmatpush1.msra.mxu0 %v1117
        %1183 = vmatprep.subr.mxu0 %v1120
        %1184 = vmatpush1.msra.mxu0 %v1119
        %1185 = vmatprep.subr.mxu0 %v1122
        %1186 = vmatpush1.msra.mxu0 %v1121
        %1187 = vmatprep.subr.mxu0 %v1124
        %1188 = vmatpush1.msra.mxu0 %v1123
        %1189 = vmatprep.subr.mxu0 %v1126
        %1190 = vmatpush1.msra.mxu0 %v1125
        %1191 = vmatprep.subr.mxu0 %v1128
        %1192 = vmatpush1.msra.mxu0 %v1127
        %1193 = vmatprep.subr.mxu0 %v1130
        %1194 = vmatpush1.msra.mxu0 %v1129
        %1195 = vmatprep.subr.mxu0 %v1132
        %1196 = vmatpush1.msra.mxu0 %v1131
        %1197 = vmatprep.subr.mxu0 %v1134
        %1198 = vmatpush1.msra.mxu0 %v1133
        %1199 = vmatprep.subr.mxu0 %v1136
        %1200 = vmatpush1.msra.mxu0 %v1135
        %1201 = vmatprep.subr.mxu0 %v1138
        %1202 = vmatpush1.msra.mxu0 %v1137
        %1203 = vmatprep.subr.mxu0 %v1140
        %1204 = vmatpush1.msra.mxu0 %v1139
        %1205 = vmatprep.subr.mxu0 %v1142
        %1206 = vmatpush1.msra.mxu0 %v1141
        %1207 = vmatprep.subr.mxu0 %v1144
        %1208 = vmatpush1.msra.mxu0 %v1143
        %1209 = vmatprep.subr.mxu0 %v1146
        %1210 = vmatpush1.msra.mxu0 %v1145
        %1211 = vmatprep.subr.mxu0 %v1148
        %1212 = vmatpush1.msra.mxu0 %v1147
        %1213 = vmatprep.subr.mxu0 %v1150
        %1214 = vmatpush1.msra.mxu0 %v1149
        %1215 = vmatprep.subr.mxu0 %v1152
        %1216 = vmatpush1.msra.mxu0 %v1151
        %1217 = vmatprep.mubr.f32.mxu0 %v1026
        %1218 = vmatmul.mubr.f32.gmra.mrb[0].mxu0 %v1025
        %v1219 = vpop.f32.mrb[0].mxu0
        %v1220 = vadd.f32 0.0, %v1219
        %v1221 = vpop.f32.mrb[0].mxu0
        %v1222 = vadd.f32 0.0, %v1221
        %1223 = vmatprep.mubr.f32.mxu0 %v1028
        %1224 = vmatmul.mubr.f32.gmra.mrb[0].mxu0 %v1027
        %v1225 = vpop.f32.mrb[0].mxu0
        %v1226 = vadd.f32 0.0, %v1225
        %v1227 = vpop.f32.mrb[0].mxu0
        %v1228 = vadd.f32 0.0, %v1227
        %1229 = vmatprep.mubr.f32.mxu0 %v1030
        %1230 = vmatmul.mubr.f32.gmra.mrb[0].mxu0 %v1029
        %v1231 = vpop.f32.mrb[0].mxu0
        %v1232 = vadd.f32 0.0, %v1231
        %v1233 = vpop.f32.mrb[0].mxu0
        %v1234 = vadd.f32 0.0, %v1233
        %1235 = vmatprep.mubr.f32.mxu0 %v1032
        %1236 = vmatmul.mubr.f32.gmra.mrb[0].mxu0 %v1031
        %v1237 = vpop.f32.mrb[0].mxu0
        %v1238 = vadd.f32 0.0, %v1237
        %v1239 = vpop.f32.mrb[0].mxu0
        %v1240 = vadd.f32 0.0, %v1239
        %1241 = vmatprep.mubr.f32.mxu0 %v1034
        %1242 = vmatmul.mubr.f32.gmra.mrb[0].mxu0 %v1033
        %v1243 = vpop.f32.mrb[0].mxu0
        %v1244 = vadd.f32 0.0, %v1243
        %v1245 = vpop.f32.mrb[0].mxu0
        %v1246 = vadd.f32 0.0, %v1245
        %1247 = vmatprep.mubr.f32.mxu0 %v1036
        %1248 = vmatmul.mubr.f32.gmra.mrb[0].mxu0 %v1035
        %v1249 = vpop.f32.mrb[0].mxu0
        %v1250 = vadd.f32 0.0, %v1249
        %v1251 = vpop.f32.mrb[0].mxu0
        %v1252 = vadd.f32 0.0, %v1251
        %1253 = vmatprep.mubr.f32.mxu0 %v1038
        %1254 = vmatmul.mubr.f32.gmra.mrb[0].mxu0 %v1037
        %v1255 = vpop.f32.mrb[0].mxu0
        %v1256 = vadd.f32 0.0, %v1255
        %v1257 = vpop.f32.mrb[0].mxu0
        %v1258 = vadd.f32 0.0, %v1257
        %1259 = vmatprep.mubr.f32.mxu0 %v1040
        %1260 = vmatmul.mubr.f32.gmra.mrb[0].mxu0 %v1039
        %v1261 = vpop.f32.mrb[0].mxu0
        %v1262 = vadd.f32 0.0, %v1261
        %v1263 = vpop.f32.mrb[0].mxu0
        %v1264 = vadd.f32 0.0, %v1263
        %1265 = vmatprep.mubr.f32.mxu0 %v1042
        %1266 = vmatmul.mubr.f32.gmra.mrb[0].mxu0 %v1041
        %v1267 = vpop.f32.mrb[0].mxu0
        %v1268 = vadd.f32 0.0, %v1267
        %v1269 = vpop.f32.mrb[0].mxu0
        %v1270 = vadd.f32 0.0, %v1269
        %1271 = vmatprep.mubr.f32.mxu0 %v1044
        %1272 = vmatmul.mubr.f32.gmra.mrb[0].mxu0 %v1043
        %v1273 = vpop.f32.mrb[0].mxu0
        %v1274 = vadd.f32 0.0, %v1273
        %v1275 = vpop.f32.mrb[0].mxu0
        %v1276 = vadd.f32 0.0, %v1275
        %1277 = vmatprep.mubr.f32.mxu0 %v1046
        %1278 = vmatmul.mubr.f32.gmra.mrb[0].mxu0 %v1045
        %v1279 = vpop.f32.mrb[0].mxu0
        %v1280 = vadd.f32 0.0, %v1279
        %v1281 = vpop.f32.mrb[0].mxu0
        %v1282 = vadd.f32 0.0, %v1281
        %1283 = vmatprep.mubr.f32.mxu0 %v1048
        %1284 = vmatmul.mubr.f32.gmra.mrb[0].mxu0 %v1047
        %v1285 = vpop.f32.mrb[0].mxu0
        %v1286 = vadd.f32 0.0, %v1285
        %v1287 = vpop.f32.mrb[0].mxu0
        %v1288 = vadd.f32 0.0, %v1287
        %1289 = vmatprep.mubr.f32.mxu0 %v1050
        %1290 = vmatmul.mubr.f32.gmra.mrb[0].mxu0 %v1049
        %v1291 = vpop.f32.mrb[0].mxu0
        %v1292 = vadd.f32 0.0, %v1291
        %v1293 = vpop.f32.mrb[0].mxu0
        %v1294 = vadd.f32 0.0, %v1293
        %1295 = vmatprep.mubr.f32.mxu0 %v1052
        %1296 = vmatmul.mubr.f32.gmra.mrb[0].mxu0 %v1051
        %v1297 = vpop.f32.mrb[0].mxu0
        %v1298 = vadd.f32 0.0, %v1297
        %v1299 = vpop.f32.mrb[0].mxu0
        %v1300 = vadd.f32 0.0, %v1299
        %1301 = vmatprep.mubr.f32.mxu0 %v1054
        %1302 = vmatmul.mubr.f32.gmra.mrb[0].mxu0 %v1053
        %v1303 = vpop.f32.mrb[0].mxu0
        %v1304 = vadd.f32 0.0, %v1303
        %v1305 = vpop.f32.mrb[0].mxu0
        %v1306 = vadd.f32 0.0, %v1305
        %1307 = vmatprep.mubr.f32.mxu0 %v1056
        %1308 = vmatmul.mubr.f32.gmra.mrb[0].mxu0 %v1055
        %v1309 = vpop.f32.mrb[0].mxu0
        %v1310 = vadd.f32 0.0, %v1309
        %v1311 = vpop.f32.mrb[0].mxu0
        %v1312 = vadd.f32 0.0, %v1311
        %1313 = vdwg.mxu0
        %v1314 = vadd.f32 %v1057, %v1220
        %v1315 = vadd.f32 %v1058, %v1222
        %v1316 = vadd.f32 %v1059, %v1226
        %v1317 = vadd.f32 %v1060, %v1228
        %v1318 = vadd.f32 %v1061, %v1232
        %v1319 = vadd.f32 %v1062, %v1234
        %v1320 = vadd.f32 %v1063, %v1238
        %v1321 = vadd.f32 %v1064, %v1240
        %v1322 = vadd.f32 %v1065, %v1244
        %v1323 = vadd.f32 %v1066, %v1246
        %v1324 = vadd.f32 %v1067, %v1250
        %v1325 = vadd.f32 %v1068, %v1252
        %v1326 = vadd.f32 %v1069, %v1256
        %v1327 = vadd.f32 %v1070, %v1258
        %v1328 = vadd.f32 %v1071, %v1262
        %v1329 = vadd.f32 %v1072, %v1264
        %v1330 = vadd.f32 %v1073, %v1268
        %v1331 = vadd.f32 %v1074, %v1270
        %v1332 = vadd.f32 %v1075, %v1274
        %v1333 = vadd.f32 %v1076, %v1276
        %v1334 = vadd.f32 %v1077, %v1280
        %v1335 = vadd.f32 %v1078, %v1282
        %v1336 = vadd.f32 %v1079, %v1286
        %v1337 = vadd.f32 %v1080, %v1288
        %v1338 = vadd.f32 %v1081, %v1292
        %v1339 = vadd.f32 %v1082, %v1294
        %v1340 = vadd.f32 %v1083, %v1298
        %v1341 = vadd.f32 %v1084, %v1300
        %v1342 = vadd.f32 %v1085, %v1304
        %v1343 = vadd.f32 %v1086, %v1306
        %v1344 = vadd.f32 %v1087, %v1310
        %v1345 = vadd.f32 %v1088, %v1312
        %1346 = vst [vmem:[#allocation2] sm:$0xff] %v1314
        %1347 = vst [vmem:[#allocation2 + $0x8] sm:$0xff] %v1315
        %1348 = vst [vmem:[#allocation2 + $0x10] sm:$0xff] %v1316
        %1349 = vst [vmem:[#allocation2 + $0x18] sm:$0xff] %v1317
        %1350 = vst [vmem:[#allocation2 + $0x20] sm:$0xff] %v1318
        %1351 = vst [vmem:[#allocation2 + $0x28] sm:$0xff] %v1319
        %1352 = vst [vmem:[#allocation2 + $0x30] sm:$0xff] %v1320
        %1353 = vst [vmem:[#allocation2 + $0x38] sm:$0xff] %v1321
        %1354 = vst [vmem:[#allocation2 + $0x40] sm:$0xff] %v1322
        %1355 = vst [vmem:[#allocation2 + $0x48] sm:$0xff] %v1323
        %1356 = vst [vmem:[#allocation2 + $0x50] sm:$0xff] %v1324
        %1357 = vst [vmem:[#allocation2 + $0x58] sm:$0xff] %v1325
        %1358 = vst [vmem:[#allocation2 + $0x60] sm:$0xff] %v1326
        %1359 = vst [vmem:[#allocation2 + $0x68] sm:$0xff] %v1327
        %1360 = vst [vmem:[#allocation2 + $0x70] sm:$0xff] %v1328
        %1361 = vst [vmem:[#allocation2 + $0x78] sm:$0xff] %v1329
        %1362 = vst [vmem:[#allocation2 + $0x80] sm:$0xff] %v1330
        %1363 = vst [vmem:[#allocation2 + $0x88] sm:$0xff] %v1331
        %1364 = vst [vmem:[#allocation2 + $0x90] sm:$0xff] %v1332
        %1365 = vst [vmem:[#allocation2 + $0x98] sm:$0xff] %v1333
        %1366 = vst [vmem:[#allocation2 + $0xa0] sm:$0xff] %v1334
        %1367 = vst [vmem:[#allocation2 + $0xa8] sm:$0xff] %v1335
        %1368 = vst [vmem:[#allocation2 + $0xb0] sm:$0xff] %v1336
        %1369 = vst [vmem:[#allocation2 + $0xb8] sm:$0xff] %v1337
        %1370 = vst [vmem:[#allocation2 + $0xc0] sm:$0xff] %v1338
        %1371 = vst [vmem:[#allocation2 + $0xc8] sm:$0xff] %v1339
        %1372 = vst [vmem:[#allocation2 + $0xd0] sm:$0xff] %v1340
        %1373 = vst [vmem:[#allocation2 + $0xd8] sm:$0xff] %v1341
        %1374 = vst [vmem:[#allocation2 + $0xe0] sm:$0xff] %v1342
        %1375 = vst [vmem:[#allocation2 + $0xe8] sm:$0xff] %v1343
        %1376 = vst [vmem:[#allocation2 + $0xf0] sm:$0xff] %v1344
        %1377 = vst [vmem:[#allocation2 + $0xf8] sm:$0xff] %v1345
        %p1378 = scmp.eq.s32.totalorder %s28, 1
        // Predicated region
        $region49: #{tpu_custom_call.1} parent=31 // pred_check
          %p1379 = pneg %p1378
        $region50: #{tpu_custom_call.1} parent=31 // pred_check_branch
          %1381 = sbr.rel (%p1379) target = $region52
        $region51: #{tpu_custom_call.1} parent=31 // pred_region
          %v1382 = vld [vmem:[#allocation2] sm:$0xff]
          %v1383 = vld [vmem:[#allocation2 + $0x8] sm:$0xff]
          %v1384 = vld [vmem:[#allocation2 + $0x10] sm:$0xff]
          %v1385 = vld [vmem:[#allocation2 + $0x18] sm:$0xff]
          %v1386 = vld [vmem:[#allocation2 + $0x20] sm:$0xff]
          %v1387 = vld [vmem:[#allocation2 + $0x28] sm:$0xff]
          %v1388 = vld [vmem:[#allocation2 + $0x30] sm:$0xff]
          %v1389 = vld [vmem:[#allocation2 + $0x38] sm:$0xff]
          %v1390 = vld [vmem:[#allocation2 + $0x40] sm:$0xff]
          %v1391 = vld [vmem:[#allocation2 + $0x48] sm:$0xff]
          %v1392 = vld [vmem:[#allocation2 + $0x50] sm:$0xff]
          %v1393 = vld [vmem:[#allocation2 + $0x58] sm:$0xff]
          %v1394 = vld [vmem:[#allocation2 + $0x60] sm:$0xff]
          %v1395 = vld [vmem:[#allocation2 + $0x68] sm:$0xff]
          %v1396 = vld [vmem:[#allocation2 + $0x70] sm:$0xff]
          %v1397 = vld [vmem:[#allocation2 + $0x78] sm:$0xff]
          %v1398 = vld [vmem:[#allocation2 + $0x80] sm:$0xff]
          %v1399 = vld [vmem:[#allocation2 + $0x88] sm:$0xff]
          %v1400 = vld [vmem:[#allocation2 + $0x90] sm:$0xff]
          %v1401 = vld [vmem:[#allocation2 + $0x98] sm:$0xff]
          %v1402 = vld [vmem:[#allocation2 + $0xa0] sm:$0xff]
          %v1403 = vld [vmem:[#allocation2 + $0xa8] sm:$0xff]
          %v1404 = vld [vmem:[#allocation2 + $0xb0] sm:$0xff]
          %v1405 = vld [vmem:[#allocation2 + $0xb8] sm:$0xff]
          %v1406 = vld [vmem:[#allocation2 + $0xc0] sm:$0xff]
          %v1407 = vld [vmem:[#allocation2 + $0xc8] sm:$0xff]
          %v1408 = vld [vmem:[#allocation2 + $0xd0] sm:$0xff]
          %v1409 = vld [vmem:[#allocation2 + $0xd8] sm:$0xff]
          %v1410 = vld [vmem:[#allocation2 + $0xe0] sm:$0xff]
          %v1411 = vld [vmem:[#allocation2 + $0xe8] sm:$0xff]
          %v1412 = vld [vmem:[#allocation2 + $0xf0] sm:$0xff]
          %v1413 = vld [vmem:[#allocation2 + $0xf8] sm:$0xff]
          %1414 = vst [vmem:[%s279] sm:$0xff] %v1382
          %1415 = vst [vmem:[%s279 + $0x8] sm:$0xff] %v1383
          %1416 = vst [vmem:[%s279 + $0x10] sm:$0xff] %v1384
          %1417 = vst [vmem:[%s279 + $0x18] sm:$0xff] %v1385
          %1418 = vst [vmem:[%s279 + $0x20] sm:$0xff] %v1386
          %1419 = vst [vmem:[%s279 + $0x28] sm:$0xff] %v1387
          %1420 = vst [vmem:[%s279 + $0x30] sm:$0xff] %v1388
          %1421 = vst [vmem:[%s279 + $0x38] sm:$0xff] %v1389
          %1422 = vst [vmem:[%s279 + $0x40] sm:$0xff] %v1390
          %1423 = vst [vmem:[%s279 + $0x48] sm:$0xff] %v1391
          %1424 = vst [vmem:[%s279 + $0x50] sm:$0xff] %v1392
          %1425 = vst [vmem:[%s279 + $0x58] sm:$0xff] %v1393
          %1426 = vst [vmem:[%s279 + $0x60] sm:$0xff] %v1394
          %1427 = vst [vmem:[%s279 + $0x68] sm:$0xff] %v1395
          %1428 = vst [vmem:[%s279 + $0x70] sm:$0xff] %v1396
          %1429 = vst [vmem:[%s279 + $0x78] sm:$0xff] %v1397
          %1430 = vst [vmem:[%s279 + $0x80] sm:$0xff] %v1398
          %1431 = vst [vmem:[%s279 + $0x88] sm:$0xff] %v1399
          %1432 = vst [vmem:[%s279 + $0x90] sm:$0xff] %v1400
          %1433 = vst [vmem:[%s279 + $0x98] sm:$0xff] %v1401
          %1434 = vst [vmem:[%s279 + $0xa0] sm:$0xff] %v1402
          %1435 = vst [vmem:[%s279 + $0xa8] sm:$0xff] %v1403
          %1436 = vst [vmem:[%s279 + $0xb0] sm:$0xff] %v1404
          %1437 = vst [vmem:[%s279 + $0xb8] sm:$0xff] %v1405
          %1438 = vst [vmem:[%s279 + $0xc0] sm:$0xff] %v1406
          %1439 = vst [vmem:[%s279 + $0xc8] sm:$0xff] %v1407
          %1440 = vst [vmem:[%s279 + $0xd0] sm:$0xff] %v1408
          %1441 = vst [vmem:[%s279 + $0xd8] sm:$0xff] %v1409
          %1442 = vst [vmem:[%s279 + $0xe0] sm:$0xff] %v1410
          %1443 = vst [vmem:[%s279 + $0xe8] sm:$0xff] %v1411
          %1444 = vst [vmem:[%s279 + $0xf0] sm:$0xff] %v1412
          %1445 = vst [vmem:[%s279 + $0xf8] sm:$0xff] %v1413
        $region52: #{tpu_custom_call.1} parent=31 // pred_fallthru
          _
        %s1446 = sand.u32 %s121, 1
        %s1447 = scalar_lea.sflag [#allocation5], %s1446
        %s1448 = sand.u32 %s121, 1
        %s1449 = smul.addr %s1448, 256
        %s1450 = scalar_lea.vmem [#allocation9], %s1449
        // Predicated region
        $region53: #{tpu_custom_call.1} parent=31 // pred_check
          %p1451 = pneg %p131
        $region54: #{tpu_custom_call.1} parent=31 // pred_check_branch
          %1453 = sbr.rel (%p1451) target = $region56
        $region55: #{tpu_custom_call.1} parent=31 // pred_region
          %s1454 = smul.u32 16, %s27
          %s1456 = ssub.s32 4096, 4096
          %1457 = vsyncadd %s1447, %s1456
          %s1458 = smul.addr %s1454, 2
          %s1459 = smul.addr %s1458, 128
          %s1460 = scalar_lea.hbm %s3, %s1459
          %s1461 = sshll.u32 %s1450, 4
          %s1462 = int_to_ptr.vmem [resolvable:$true] %s1461
          %1467 = dma.vmem_to_hbm [thread:$0]  %s1462, 4096, %s1460, %s1447, 256, 256, 16
        $region56: #{tpu_custom_call.1} parent=31 // pred_fallthru
          _
      $region32: #{tpu_custom_call.1} parent=5 // pred_fallthru
        _
      %p1468 = scmp.le.s32.totalorder 2, %s18
      // Predicated region
      $region57: #{tpu_custom_call.1} parent=5 // pred_check
        %p1469 = pneg %p1468
      $region58: #{tpu_custom_call.1} parent=5 // pred_check_branch
        %1471 = sbr.rel (%p1469) target = $region60
      $region59: #{tpu_custom_call.1} parent=5 // pred_region
        %s1472 = ssub.s32 %s18, 2
        // Predicated region
        $region61: #{tpu_custom_call.1} parent=59 // pred_check
          %p1473 = pneg %p137
        $region62: #{tpu_custom_call.1} parent=59 // pred_check_branch
          %1475 = sbr.rel (%p1473) target = $region64
        $region63: #{tpu_custom_call.1} parent=59 // pred_region
          %s1476 = sand.u32 %s122, 1
          %s1477 = scalar_lea.sflag [#allocation5], %s1476
          %s1478 = sand.u32 %s122, 1
          %s1479 = smul.addr %s1478, 256
          %s1480 = scalar_lea.vmem [#allocation9], %s1479
          %1481 = dma.done %s1477, 4096
        $region64: #{tpu_custom_call.1} parent=59 // pred_fallthru
          _
      $region60: #{tpu_custom_call.1} parent=5 // pred_fallthru
        _
    $region6: #{tpu_custom_call.1} parent=1 // loop_footer
      %s22 = sadd.s32 1, %s18
    $region7: #{tpu_custom_call.1} parent=1 // loop_footer_branch
      %17 = sbr.rel target = $region3
    $region8: #{tpu_custom_call.1} parent=1 // loop_exit
      _
    %1482 = vsyncpa [#allocation4], 1
    %s1483 = scalar_lea.sflag [#allocation4], 1
    %1484 = vsyncpa %s1483, 1
    %1485 = vsyncpa [#allocation7], 1
    %s1486 = scalar_lea.sflag [#allocation7], 1
    %1487 = vsyncpa %s1486, 1
    %1488 = vsyncpa [#allocation5], 1
    %s1489 = scalar_lea.sflag [#allocation5], 1
    %1490 = vsyncpa %s1489, 1

</llo_original>
